<compile_context>
chip_gen: v5e
topology: v5e:2x2
jax: 0.10.0
libtpu: 0.0.40
codegen_flags: <defaults>
</compile_context>

<pallas_src>
import functools
import math

import jax
import jax.numpy as jnp
from jax.experimental import pallas as pl
from jax.experimental.pallas import tpu as pltpu


def graph_generate_kernel(max_offset,
                          x_ref, wsp_ref, wsx_ref, bs_ref,
                          wop_ref, wox_ref, bo_ref, wt_ref, bt_ref,
                          pooled_ref, attn_ref):
    x = x_ref[0]                                   # (T, C) f32
    T, C = x.shape
    H = wt_ref.shape[0]

    # ---- MaxPool1d over the hidden (lane) axis: window 2*off+1, stride 1, -inf pad.
    # Banded (C_out, C_src) window mask + lane reduce: pure VPU/XLU, no roll/concat.
    c_out = jax.lax.broadcasted_iota(jnp.int32, (C, C), 0)
    c_src = jax.lax.broadcasted_iota(jnp.int32, (C, C), 1)
    window = jnp.abs(c_out - c_src) <= max_offset                       # (C, C)
    pooled = jnp.max(
        jnp.where(window[None, :, :], x[:, None, :], -jnp.inf), axis=-1)  # (T, C)
    pooled_ref[0] = pooled.astype(pooled_ref.dtype)

    # ---- subj / obj projections of x_new = [pooled | x].  Weights were pre-split and
    # pre-transposed in the wrapper, so no in-kernel concat is needed.
    # TODO(synk): nn.Dropout(input_dropout) is identity in eval mode; training-mode
    #             dropout is not implemented.
    subj = (jnp.dot(pooled, wsp_ref[...], preferred_element_type=jnp.float32)
            + jnp.dot(x, wsx_ref[...], preferred_element_type=jnp.float32)
            + bs_ref[...])                                              # (T, C)
    obj = (jnp.dot(pooled, wop_ref[...], preferred_element_type=jnp.float32)
           + jnp.dot(x, wox_ref[...], preferred_element_type=jnp.float32)
           + bo_ref[...])                                               # (T, C)

    # ---- pairwise |subj_j - obj_i|: abs_multi[i, j, c] = |subj[j, c] - obj[i, c]|
    absdiff = jnp.abs(subj[None, :, :] - obj[:, None, :])               # (T_i, T_j, C)

    # ---- per-head Linear(C -> 1): broadcast-multiply + lane reduce (degenerate-N,
    # kept off the MXU), then relu + numerically-stable softmax over j (lane axis).
    for h in range(H):
        w_h = wt_ref[h]                                                 # (1, C)
        b_h = bt_ref[h]                                                 # (1, 1)
        scores = jnp.sum(absdiff * w_h, axis=-1) + b_h                  # (T_i, T_j)
        scores = jnp.maximum(scores, 0.0)                               # relu
        m = jnp.max(scores, axis=-1, keepdims=True)
        e = jnp.exp(scores - m)
        attn = e / jnp.sum(e, axis=-1, keepdims=True)                   # softmax over j
        attn_ref[0, h] = attn.astype(attn_ref.dtype)


def graph_generate(x, params, *, max_offset, num_heads):
    """x: (B, T, C) f32 -> (x_new (B, T, 2C), [attn_h (B, T, T)] * num_heads)."""
    B, T, C = x.shape
    H = num_heads

    w_subj, b_subj = params["w_subj"], params["b_subj"]    # (C, 2C), (C,)
    w_obj, b_obj = params["w_obj"], params["b_obj"]        # (C, 2C), (C,)
    w_t, b_t = params["w_t"], params["b_t"]                # (H, C), (H,)

    # Layout plumbing outside the kernel: split the 2C->C weights into the pooled-half
    # and x-half factors and pre-transpose to (C_in, C_out).
    wsp = jnp.transpose(w_subj[:, :C])                     # (C, C)  acts on x_pooled
    wsx = jnp.transpose(w_subj[:, C:])                     # (C, C)  acts on x
    wop = jnp.transpose(w_obj[:, :C])
    wox = jnp.transpose(w_obj[:, C:])
    bs = b_subj.reshape(1, C)
    bo = b_obj.reshape(1, C)
    wt = w_t.reshape(H, 1, C)
    bt = b_t.reshape(H, 1, 1)

    kernel = functools.partial(graph_generate_kernel, max_offset)

    pooled, attn = pl.pallas_call(
        kernel,
        out_shape=(
            jax.ShapeDtypeStruct((B, T, C), x.dtype),       # x_pooled
            jax.ShapeDtypeStruct((B, H, T, T), x.dtype),    # attention, lane-dense in j
        ),
        grid_spec=pltpu.PrefetchScalarGridSpec(
            num_scalar_prefetch=0,
            grid=(B,),
            in_specs=[
                pl.BlockSpec((1, T, C), lambda b: (b, 0, 0)),        # x
                pl.BlockSpec((C, C), lambda b: (0, 0)),              # wsp
                pl.BlockSpec((C, C), lambda b: (0, 0)),              # wsx
                pl.BlockSpec((1, C), lambda b: (0, 0)),              # b_subj
                pl.BlockSpec((C, C), lambda b: (0, 0)),              # wop
                pl.BlockSpec((C, C), lambda b: (0, 0)),              # wox
                pl.BlockSpec((1, C), lambda b: (0, 0)),              # b_obj
                pl.BlockSpec((H, 1, C), lambda b: (0, 0, 0)),        # w_t
                pl.BlockSpec((H, 1, 1), lambda b: (0, 0, 0)),        # b_t
            ],
            out_specs=[
                pl.BlockSpec((1, T, C), lambda b: (b, 0, 0)),        # x_pooled
                pl.BlockSpec((1, H, T, T), lambda b: (b, 0, 0, 0)),  # attn
            ],
        ),
        compiler_params=pltpu.CompilerParams(
            dimension_semantics=("parallel",)),
    )(x, wsp, wsx, bs, wop, wox, bo, wt, bt)

    # x_new = cat([x_pooled, x], dim=2) done in the wrapper — the kernel never
    # re-writes the untouched x slab through HBM.
    x_new = jnp.concatenate([pooled, x], axis=-1)
    attn_adj_list = [attn[:, h] for h in range(H)]
    # TODO(synk): optional `mask` branch (masked_fill of attention with 0) is not
    #             implemented; this matches the mask=None call path.
    return x_new, attn_adj_list


def graph_generate_ref(x, params, *, max_offset, num_heads):
    """Pure-JAX reference mirroring the PyTorch forward (eval mode, mask=None)."""
    B, T, C = x.shape
    off = max_offset
    xp = jnp.pad(x, ((0, 0), (0, 0), (off, off)), constant_values=-jnp.inf)
    x_pooled = jnp.max(
        jnp.stack([xp[:, :, s:s + C] for s in range(2 * off + 1)], axis=0), axis=0)
    x_new = jnp.concatenate([x_pooled, x], axis=-1)
    hp = jax.lax.Precision.HIGHEST
    subj = jnp.einsum("btk,ck->btc", x_new, params["w_subj"], precision=hp) + params["b_subj"]
    obj = jnp.einsum("btk,ck->btc", x_new, params["w_obj"], precision=hp) + params["b_obj"]
    absdiff = jnp.abs(subj[:, None, :, :] - obj[:, :, None, :])     # (B, i, j, C)
    rep = jnp.einsum("bijc,hc->bijh", absdiff, params["w_t"], precision=hp) + params["b_t"]
    attn = jax.nn.softmax(jax.nn.relu(rep), axis=2)                 # softmax over j
    return x_new, [attn[..., h] for h in range(num_heads)]


if __name__ == "__main__":
    B, T, C, H = 2, 8, 32, 4          # batch, seq, graph_hidden_size, heads
    MAX_OFFSET = 2                     # -> MaxPool1d window = 5

    key = jax.random.PRNGKey(0)
    ks = jax.random.split(key, 7)
    x = jax.random.normal(ks[0], (B, T, C), dtype=jnp.float32)
    b2 = 1.0 / math.sqrt(2 * C)
    b1 = 1.0 / math.sqrt(C)
    params = {
        "w_subj": jax.random.uniform(ks[1], (C, 2 * C), jnp.float32, -b2, b2),
        "b_subj": jax.random.uniform(ks[2], (C,), jnp.float32, -b2, b2),
        "w_obj": jax.random.uniform(ks[3], (C, 2 * C), jnp.float32, -b2, b2),
        "b_obj": jax.random.uniform(ks[4], (C,), jnp.float32, -b2, b2),
        "w_t": jax.random.uniform(ks[5], (H, C), jnp.float32, -b1, b1),
        "b_t": jax.random.uniform(ks[6], (H,), jnp.float32, -b1, b1),
    }

    x_new, attn_list = graph_generate(x, params, max_offset=MAX_OFFSET, num_heads=H)
    x_new = jax.block_until_ready(x_new)
    attn_list = [jax.block_until_ready(a) for a in attn_list]

    x_new_ref, attn_list_ref = graph_generate_ref(
        x, params, max_offset=MAX_OFFSET, num_heads=H)

    assert x_new.shape == (B, T, 2 * C)
    assert len(attn_list) == H and attn_list[0].shape == (B, T, T)
    assert jnp.allclose(x_new, x_new_ref, atol=1e-5, rtol=1e-5)
    for a, ar in zip(attn_list, attn_list_ref):
        assert jnp.allclose(a, ar, atol=1e-3, rtol=1e-3)
        assert jnp.allclose(jnp.sum(a, axis=-1), 1.0, atol=1e-4)   # rows sum to 1

    print("KERNEL_OK")
</pallas_src>

<mosaic_0001>
module attributes {stable_mosaic.version = 11 : i64} {
  func.func @graph_generate_kernel(%arg0: i32, %arg1: memref<1x8x32xf32, #tpu.memory_space<vmem>>, %arg2: memref<32x32xf32, #tpu.memory_space<vmem>>, %arg3: memref<32x32xf32, #tpu.memory_space<vmem>>, %arg4: memref<1x32xf32, #tpu.memory_space<vmem>>, %arg5: memref<32x32xf32, #tpu.memory_space<vmem>>, %arg6: memref<32x32xf32, #tpu.memory_space<vmem>>, %arg7: memref<1x32xf32, #tpu.memory_space<vmem>>, %arg8: memref<4x1x32xf32, #tpu.memory_space<vmem>>, %arg9: memref<4x1x1xf32, #tpu.memory_space<vmem>>, %arg10: memref<1x8x32xf32, #tpu.memory_space<vmem>>, %arg11: memref<1x4x8x8xf32, #tpu.memory_space<vmem>>) attributes {dimension_semantics = [#tpu.dimension_semantics<parallel>], iteration_bounds = array<i64: 2>, scalar_prefetch = 0 : i64, scratch_operands = 0 : i64, tpu.core_type = #tpu.core_type<tc>, window_params = [{transform_indices = @transform_0, window_bounds = array<i64: 1, 8, 32>}, {pipeline_mode = #tpu.pipeline_mode<synchronous>, transform_indices = @transform_1, window_bounds = array<i64: 32, 32>}, {pipeline_mode = #tpu.pipeline_mode<synchronous>, transform_indices = @transform_2, window_bounds = array<i64: 32, 32>}, {pipeline_mode = #tpu.pipeline_mode<synchronous>, transform_indices = @transform_3, window_bounds = array<i64: 1, 32>}, {pipeline_mode = #tpu.pipeline_mode<synchronous>, transform_indices = @transform_4, window_bounds = array<i64: 32, 32>}, {pipeline_mode = #tpu.pipeline_mode<synchronous>, transform_indices = @transform_5, window_bounds = array<i64: 32, 32>}, {pipeline_mode = #tpu.pipeline_mode<synchronous>, transform_indices = @transform_6, window_bounds = array<i64: 1, 32>}, {pipeline_mode = #tpu.pipeline_mode<synchronous>, transform_indices = @transform_7, window_bounds = array<i64: 4, 1, 32>}, {pipeline_mode = #tpu.pipeline_mode<synchronous>, transform_indices = @transform_8, window_bounds = array<i64: 4, 1, 1>}, {transform_indices = @transform_9, window_bounds = array<i64: 1, 8, 32>}, {transform_indices = @transform_10, window_bounds = array<i64: 1, 4, 8, 8>}]} {
    %c0 = arith.constant 0 : index
    %c0_0 = arith.constant 0 : index
    %c0_1 = arith.constant 0 : index
    %0 = vector.load %arg1[%c0, %c0_0, %c0_1] : memref<1x8x32xf32, #tpu.memory_space<vmem>>, vector<1x8x32xf32>
    %1 = vector.shape_cast %0 : vector<1x8x32xf32> to vector<8x32xf32>
    %2 = tpu.iota {dimensions = array<i32: 0>} : vector<32x32xi32>
    %3 = tpu.iota {dimensions = array<i32: 1>} : vector<32x32xi32>
    %4 = arith.subi %2, %3 : vector<32x32xi32>
    %5 = math.absi %4 : vector<32x32xi32>
    %c2_i32 = arith.constant 2 : i32
    %6 = vector.broadcast %c2_i32 : i32 to vector<32x32xi32>
    %7 = arith.cmpi sle, %5, %6 : vector<32x32xi32>
    %8 = vector.shape_cast %7 : vector<32x32xi1> to vector<1x32x32xi1>
    %9 = vector.shape_cast %1 : vector<8x32xf32> to vector<8x1x32xf32>
    %cst = arith.constant 0xFF800000 : f32
    %10 = vector.shape_cast %8 : vector<1x32x32xi1> to vector<1x32x32xi1>
    %11 = vector.broadcast %10 : vector<1x32x32xi1> to vector<8x32x32xi1>
    %12 = vector.shape_cast %9 : vector<8x1x32xf32> to vector<8x1x32xf32>
    %13 = vector.broadcast %12 : vector<8x1x32xf32> to vector<8x32x32xf32>
    %14 = vector.broadcast %cst : f32 to vector<8x32x32xf32>
    %15 = arith.select %11, %13, %14 : vector<8x32x32xi1>, vector<8x32x32xf32>
    %cst_2 = arith.constant dense<0xFF800000> : vector<8x32xf32>
    %16 = vector.multi_reduction <maximumf>, %15, %cst_2 [2] : vector<8x32x32xf32> to vector<8x32xf32>
    %c0_3 = arith.constant 0 : index
    %c0_4 = arith.constant 0 : index
    %c0_5 = arith.constant 0 : index
    %17 = vector.load %arg10[%c0_3, %c0_4, %c0_5] : memref<1x8x32xf32, #tpu.memory_space<vmem>>, vector<1x8x32xf32>
    %18 = vector.shape_cast %17 : vector<1x8x32xf32> to vector<8x32xf32>
    %19 = vector.shape_cast %16 : vector<8x32xf32> to vector<1x8x32xf32>
    tpu.vector_store %arg10[%c0_3, %c0_4, %c0_5], %19 {strides = array<i32>} : memref<1x8x32xf32, #tpu.memory_space<vmem>>, vector<1x8x32xf32>,
    %c0_6 = arith.constant 0 : index
    %c0_7 = arith.constant 0 : index
    %20 = vector.load %arg2[%c0_6, %c0_7] : memref<32x32xf32, #tpu.memory_space<vmem>>, vector<32x32xf32>
    %cst_8 = arith.constant dense<0.000000e+00> : vector<8x32xf32>
    %21 = tpu.matmul %16, %20, %cst_8 {dimension_numbers = #tpu.dot_dimension_numbers<[1], [0], [0], [1], [0, 0, 1, 1], [], []>} : vector<8x32xf32>, vector<32x32xf32>, vector<8x32xf32> -> vector<8x32xf32>
    %c0_9 = arith.constant 0 : index
    %c0_10 = arith.constant 0 : index
    %22 = vector.load %arg3[%c0_9, %c0_10] : memref<32x32xf32, #tpu.memory_space<vmem>>, vector<32x32xf32>
    %cst_11 = arith.constant dense<0.000000e+00> : vector<8x32xf32>
    %23 = tpu.matmul %1, %22, %cst_11 {dimension_numbers = #tpu.dot_dimension_numbers<[1], [0], [0], [1], [0, 0, 1, 1], [], []>} : vector<8x32xf32>, vector<32x32xf32>, vector<8x32xf32> -> vector<8x32xf32>
    %24 = arith.addf %21, %23 : vector<8x32xf32>
    %c0_12 = arith.constant 0 : index
    %c0_13 = arith.constant 0 : index
    %25 = vector.load %arg4[%c0_12, %c0_13] : memref<1x32xf32, #tpu.memory_space<vmem>>, vector<1x32xf32>
    %26 = vector.broadcast %25 : vector<1x32xf32> to vector<8x32xf32>
    %27 = arith.addf %24, %26 : vector<8x32xf32>
    %c0_14 = arith.constant 0 : index
    %c0_15 = arith.constant 0 : index
    %28 = vector.load %arg5[%c0_14, %c0_15] : memref<32x32xf32, #tpu.memory_space<vmem>>, vector<32x32xf32>
    %cst_16 = arith.constant dense<0.000000e+00> : vector<8x32xf32>
    %29 = tpu.matmul %16, %28, %cst_16 {dimension_numbers = #tpu.dot_dimension_numbers<[1], [0], [0], [1], [0, 0, 1, 1], [], []>} : vector<8x32xf32>, vector<32x32xf32>, vector<8x32xf32> -> vector<8x32xf32>
    %c0_17 = arith.constant 0 : index
    %c0_18 = arith.constant 0 : index
    %30 = vector.load %arg6[%c0_17, %c0_18] : memref<32x32xf32, #tpu.memory_space<vmem>>, vector<32x32xf32>
    %cst_19 = arith.constant dense<0.000000e+00> : vector<8x32xf32>
    %31 = tpu.matmul %1, %30, %cst_19 {dimension_numbers = #tpu.dot_dimension_numbers<[1], [0], [0], [1], [0, 0, 1, 1], [], []>} : vector<8x32xf32>, vector<32x32xf32>, vector<8x32xf32> -> vector<8x32xf32>
    %32 = arith.addf %29, %31 : vector<8x32xf32>
    %c0_20 = arith.constant 0 : index
    %c0_21 = arith.constant 0 : index
    %33 = vector.load %arg7[%c0_20, %c0_21] : memref<1x32xf32, #tpu.memory_space<vmem>>, vector<1x32xf32>
    %34 = vector.broadcast %33 : vector<1x32xf32> to vector<8x32xf32>
    %35 = arith.addf %32, %34 : vector<8x32xf32>
    %36 = vector.shape_cast %27 : vector<8x32xf32> to vector<1x8x32xf32>
    %37 = vector.shape_cast %35 : vector<8x32xf32> to vector<8x1x32xf32>
    %38 = vector.broadcast %36 : vector<1x8x32xf32> to vector<8x8x32xf32>
    %39 = vector.broadcast %37 : vector<8x1x32xf32> to vector<8x8x32xf32>
    %40 = arith.subf %38, %39 : vector<8x8x32xf32>
    %41 = math.absf %40 : vector<8x8x32xf32>
    %c0_22 = arith.constant 0 : index
    %c0_23 = arith.constant 0 : index
    %c0_24 = arith.constant 0 : index
    %42 = vector.load %arg8[%c0_22, %c0_23, %c0_24] : memref<4x1x32xf32, #tpu.memory_space<vmem>>, vector<1x1x32xf32>
    %43 = vector.shape_cast %42 : vector<1x1x32xf32> to vector<1x32xf32>
    %c0_25 = arith.constant 0 : index
    %c0_26 = arith.constant 0 : index
    %c0_27 = arith.constant 0 : index
    %44 = vector.load %arg9[%c0_25, %c0_26, %c0_27] : memref<4x1x1xf32, #tpu.memory_space<vmem>>, vector<1x1x1xf32>
    %45 = vector.shape_cast %44 : vector<1x1x1xf32> to vector<1x1xf32>
    %46 = vector.shape_cast %43 : vector<1x32xf32> to vector<1x1x32xf32>
    %47 = vector.broadcast %46 : vector<1x1x32xf32> to vector<8x8x32xf32>
    %48 = arith.mulf %41, %47 : vector<8x8x32xf32>
    %cst_28 = arith.constant dense<0.000000e+00> : vector<8x8xf32>
    %49 = vector.multi_reduction <add>, %48, %cst_28 [2] : vector<8x8x32xf32> to vector<8x8xf32>
    %50 = vector.broadcast %45 : vector<1x1xf32> to vector<8x8xf32>
    %51 = arith.addf %49, %50 : vector<8x8xf32>
    %cst_29 = arith.constant 0.000000e+00 : f32
    %52 = vector.broadcast %cst_29 : f32 to vector<8x8xf32>
    %53 = arith.maximumf %51, %52 : vector<8x8xf32>
    %cst_30 = arith.constant dense<0xFF800000> : vector<8xf32>
    %54 = vector.multi_reduction <maximumf>, %53, %cst_30 [1] : vector<8x8xf32> to vector<8xf32>
    %55 = vector.shape_cast %54 : vector<8xf32> to vector<8x1xf32>
    %56 = vector.broadcast %55 : vector<8x1xf32> to vector<8x8xf32>
    %57 = arith.subf %53, %56 : vector<8x8xf32>
    %58 = math.exp %57 : vector<8x8xf32>
    %cst_31 = arith.constant dense<0.000000e+00> : vector<8xf32>
    %59 = vector.multi_reduction <add>, %58, %cst_31 [1] : vector<8x8xf32> to vector<8xf32>
    %60 = vector.shape_cast %59 : vector<8xf32> to vector<8x1xf32>
    %61 = vector.broadcast %60 : vector<8x1xf32> to vector<8x8xf32>
    %62 = arith.divf %58, %61 : vector<8x8xf32>
    %c0_32 = arith.constant 0 : index
    %c0_33 = arith.constant 0 : index
    %c0_34 = arith.constant 0 : index
    %c0_35 = arith.constant 0 : index
    %63 = vector.load %arg11[%c0_32, %c0_33, %c0_34, %c0_35] : memref<1x4x8x8xf32, #tpu.memory_space<vmem>>, vector<1x1x8x8xf32>
    %64 = vector.shape_cast %63 : vector<1x1x8x8xf32> to vector<8x8xf32>
    %65 = vector.shape_cast %62 : vector<8x8xf32> to vector<1x1x8x8xf32>
    tpu.vector_store %arg11[%c0_32, %c0_33, %c0_34, %c0_35], %65 {strides = array<i32>} : memref<1x4x8x8xf32, #tpu.memory_space<vmem>>, vector<1x1x8x8xf32>,
    %c1 = arith.constant 1 : index
    %c0_36 = arith.constant 0 : index
    %c0_37 = arith.constant 0 : index
    %66 = vector.load %arg8[%c1, %c0_36, %c0_37] : memref<4x1x32xf32, #tpu.memory_space<vmem>>, vector<1x1x32xf32>
    %67 = vector.shape_cast %66 : vector<1x1x32xf32> to vector<1x32xf32>
    %c1_38 = arith.constant 1 : index
    %c0_39 = arith.constant 0 : index
    %c0_40 = arith.constant 0 : index
    %68 = vector.load %arg9[%c1_38, %c0_39, %c0_40] : memref<4x1x1xf32, #tpu.memory_space<vmem>>, vector<1x1x1xf32>
    %69 = vector.shape_cast %68 : vector<1x1x1xf32> to vector<1x1xf32>
    %70 = vector.shape_cast %67 : vector<1x32xf32> to vector<1x1x32xf32>
    %71 = vector.broadcast %70 : vector<1x1x32xf32> to vector<8x8x32xf32>
    %72 = arith.mulf %41, %71 : vector<8x8x32xf32>
    %cst_41 = arith.constant dense<0.000000e+00> : vector<8x8xf32>
    %73 = vector.multi_reduction <add>, %72, %cst_41 [2] : vector<8x8x32xf32> to vector<8x8xf32>
    %74 = vector.broadcast %69 : vector<1x1xf32> to vector<8x8xf32>
    %75 = arith.addf %73, %74 : vector<8x8xf32>
    %cst_42 = arith.constant 0.000000e+00 : f32
    %76 = vector.broadcast %cst_42 : f32 to vector<8x8xf32>
    %77 = arith.maximumf %75, %76 : vector<8x8xf32>
    %cst_43 = arith.constant dense<0xFF800000> : vector<8xf32>
    %78 = vector.multi_reduction <maximumf>, %77, %cst_43 [1] : vector<8x8xf32> to vector<8xf32>
    %79 = vector.shape_cast %78 : vector<8xf32> to vector<8x1xf32>
    %80 = vector.broadcast %79 : vector<8x1xf32> to vector<8x8xf32>
    %81 = arith.subf %77, %80 : vector<8x8xf32>
    %82 = math.exp %81 : vector<8x8xf32>
    %cst_44 = arith.constant dense<0.000000e+00> : vector<8xf32>
    %83 = vector.multi_reduction <add>, %82, %cst_44 [1] : vector<8x8xf32> to vector<8xf32>
    %84 = vector.shape_cast %83 : vector<8xf32> to vector<8x1xf32>
    %85 = vector.broadcast %84 : vector<8x1xf32> to vector<8x8xf32>
    %86 = arith.divf %82, %85 : vector<8x8xf32>
    %c0_45 = arith.constant 0 : index
    %c1_46 = arith.constant 1 : index
    %c0_47 = arith.constant 0 : index
    %c0_48 = arith.constant 0 : index
    %87 = vector.load %arg11[%c0_45, %c1_46, %c0_47, %c0_48] : memref<1x4x8x8xf32, #tpu.memory_space<vmem>>, vector<1x1x8x8xf32>
    %88 = vector.shape_cast %87 : vector<1x1x8x8xf32> to vector<8x8xf32>
    %89 = vector.shape_cast %86 : vector<8x8xf32> to vector<1x1x8x8xf32>
    tpu.vector_store %arg11[%c0_45, %c1_46, %c0_47, %c0_48], %89 {strides = array<i32>} : memref<1x4x8x8xf32, #tpu.memory_space<vmem>>, vector<1x1x8x8xf32>,
    %c2 = arith.constant 2 : index
    %c0_49 = arith.constant 0 : index
    %c0_50 = arith.constant 0 : index
    %90 = vector.load %arg8[%c2, %c0_49, %c0_50] : memref<4x1x32xf32, #tpu.memory_space<vmem>>, vector<1x1x32xf32>
    %91 = vector.shape_cast %90 : vector<1x1x32xf32> to vector<1x32xf32>
    %c2_51 = arith.constant 2 : index
    %c0_52 = arith.constant 0 : index
    %c0_53 = arith.constant 0 : index
    %92 = vector.load %arg9[%c2_51, %c0_52, %c0_53] : memref<4x1x1xf32, #tpu.memory_space<vmem>>, vector<1x1x1xf32>
    %93 = vector.shape_cast %92 : vector<1x1x1xf32> to vector<1x1xf32>
    %94 = vector.shape_cast %91 : vector<1x32xf32> to vector<1x1x32xf32>
    %95 = vector.broadcast %94 : vector<1x1x32xf32> to vector<8x8x32xf32>
    %96 = arith.mulf %41, %95 : vector<8x8x32xf32>
    %cst_54 = arith.constant dense<0.000000e+00> : vector<8x8xf32>
    %97 = vector.multi_reduction <add>, %96, %cst_54 [2] : vector<8x8x32xf32> to vector<8x8xf32>
    %98 = vector.broadcast %93 : vector<1x1xf32> to vector<8x8xf32>
    %99 = arith.addf %97, %98 : vector<8x8xf32>
    %cst_55 = arith.constant 0.000000e+00 : f32
    %100 = vector.broadcast %cst_55 : f32 to vector<8x8xf32>
    %101 = arith.maximumf %99, %100 : vector<8x8xf32>
    %cst_56 = arith.constant dense<0xFF800000> : vector<8xf32>
    %102 = vector.multi_reduction <maximumf>, %101, %cst_56 [1] : vector<8x8xf32> to vector<8xf32>
    %103 = vector.shape_cast %102 : vector<8xf32> to vector<8x1xf32>
    %104 = vector.broadcast %103 : vector<8x1xf32> to vector<8x8xf32>
    %105 = arith.subf %101, %104 : vector<8x8xf32>
    %106 = math.exp %105 : vector<8x8xf32>
    %cst_57 = arith.constant dense<0.000000e+00> : vector<8xf32>
    %107 = vector.multi_reduction <add>, %106, %cst_57 [1] : vector<8x8xf32> to vector<8xf32>
    %108 = vector.shape_cast %107 : vector<8xf32> to vector<8x1xf32>
    %109 = vector.broadcast %108 : vector<8x1xf32> to vector<8x8xf32>
    %110 = arith.divf %106, %109 : vector<8x8xf32>
    %c0_58 = arith.constant 0 : index
    %c2_59 = arith.constant 2 : index
    %c0_60 = arith.constant 0 : index
    %c0_61 = arith.constant 0 : index
    %111 = vector.load %arg11[%c0_58, %c2_59, %c0_60, %c0_61] : memref<1x4x8x8xf32, #tpu.memory_space<vmem>>, vector<1x1x8x8xf32>
    %112 = vector.shape_cast %111 : vector<1x1x8x8xf32> to vector<8x8xf32>
    %113 = vector.shape_cast %110 : vector<8x8xf32> to vector<1x1x8x8xf32>
    tpu.vector_store %arg11[%c0_58, %c2_59, %c0_60, %c0_61], %113 {strides = array<i32>} : memref<1x4x8x8xf32, #tpu.memory_space<vmem>>, vector<1x1x8x8xf32>,
    %c3 = arith.constant 3 : index
    %c0_62 = arith.constant 0 : index
    %c0_63 = arith.constant 0 : index
    %114 = vector.load %arg8[%c3, %c0_62, %c0_63] : memref<4x1x32xf32, #tpu.memory_space<vmem>>, vector<1x1x32xf32>
    %115 = vector.shape_cast %114 : vector<1x1x32xf32> to vector<1x32xf32>
    %c3_64 = arith.constant 3 : index
    %c0_65 = arith.constant 0 : index
    %c0_66 = arith.constant 0 : index
    %116 = vector.load %arg9[%c3_64, %c0_65, %c0_66] : memref<4x1x1xf32, #tpu.memory_space<vmem>>, vector<1x1x1xf32>
    %117 = vector.shape_cast %116 : vector<1x1x1xf32> to vector<1x1xf32>
    %118 = vector.shape_cast %115 : vector<1x32xf32> to vector<1x1x32xf32>
    %119 = vector.broadcast %118 : vector<1x1x32xf32> to vector<8x8x32xf32>
    %120 = arith.mulf %41, %119 : vector<8x8x32xf32>
    %cst_67 = arith.constant dense<0.000000e+00> : vector<8x8xf32>
    %121 = vector.multi_reduction <add>, %120, %cst_67 [2] : vector<8x8x32xf32> to vector<8x8xf32>
    %122 = vector.broadcast %117 : vector<1x1xf32> to vector<8x8xf32>
    %123 = arith.addf %121, %122 : vector<8x8xf32>
    %cst_68 = arith.constant 0.000000e+00 : f32
    %124 = vector.broadcast %cst_68 : f32 to vector<8x8xf32>
    %125 = arith.maximumf %123, %124 : vector<8x8xf32>
    %cst_69 = arith.constant dense<0xFF800000> : vector<8xf32>
    %126 = vector.multi_reduction <maximumf>, %125, %cst_69 [1] : vector<8x8xf32> to vector<8xf32>
    %127 = vector.shape_cast %126 : vector<8xf32> to vector<8x1xf32>
    %128 = vector.broadcast %127 : vector<8x1xf32> to vector<8x8xf32>
    %129 = arith.subf %125, %128 : vector<8x8xf32>
    %130 = math.exp %129 : vector<8x8xf32>
    %cst_70 = arith.constant dense<0.000000e+00> : vector<8xf32>
    %131 = vector.multi_reduction <add>, %130, %cst_70 [1] : vector<8x8xf32> to vector<8xf32>
    %132 = vector.shape_cast %131 : vector<8xf32> to vector<8x1xf32>
    %133 = vector.broadcast %132 : vector<8x1xf32> to vector<8x8xf32>
    %134 = arith.divf %130, %133 : vector<8x8xf32>
    %c0_71 = arith.constant 0 : index
    %c3_72 = arith.constant 3 : index
    %c0_73 = arith.constant 0 : index
    %c0_74 = arith.constant 0 : index
    %135 = vector.load %arg11[%c0_71, %c3_72, %c0_73, %c0_74] : memref<1x4x8x8xf32, #tpu.memory_space<vmem>>, vector<1x1x8x8xf32>
    %136 = vector.shape_cast %135 : vector<1x1x8x8xf32> to vector<8x8xf32>
    %137 = vector.shape_cast %134 : vector<8x8xf32> to vector<1x1x8x8xf32>
    tpu.vector_store %arg11[%c0_71, %c3_72, %c0_73, %c0_74], %137 {strides = array<i32>} : memref<1x4x8x8xf32, #tpu.memory_space<vmem>>, vector<1x1x8x8xf32>,
    return
  }
  func.func @transform_0(%arg0: i32) -> (i32, i32, i32) {
    %c0_i32 = arith.constant 0 : i32
    %c0_i32_0 = arith.constant 0 : i32
    %c0_i32_1 = arith.constant 0 : i32
    return %arg0, %c0_i32, %c0_i32_0 : i32, i32, i32
  }
  func.func @transform_1(%arg0: i32) -> (i32, i32) {
    %c0_i32 = arith.constant 0 : i32
    %c0_i32_0 = arith.constant 0 : i32
    %c0_i32_1 = arith.constant 0 : i32
    return %c0_i32, %c0_i32_0 : i32, i32
  }
  func.func @transform_2(%arg0: i32) -> (i32, i32) {
    %c0_i32 = arith.constant 0 : i32
    %c0_i32_0 = arith.constant 0 : i32
    %c0_i32_1 = arith.constant 0 : i32
    return %c0_i32, %c0_i32_0 : i32, i32
  }
  func.func @transform_3(%arg0: i32) -> (i32, i32) {
    %c0_i32 = arith.constant 0 : i32
    %c0_i32_0 = arith.constant 0 : i32
    %c0_i32_1 = arith.constant 0 : i32
    return %c0_i32, %c0_i32_0 : i32, i32
  }
  func.func @transform_4(%arg0: i32) -> (i32, i32) {
    %c0_i32 = arith.constant 0 : i32
    %c0_i32_0 = arith.constant 0 : i32
    %c0_i32_1 = arith.constant 0 : i32
    return %c0_i32, %c0_i32_0 : i32, i32
  }
  func.func @transform_5(%arg0: i32) -> (i32, i32) {
    %c0_i32 = arith.constant 0 : i32
    %c0_i32_0 = arith.constant 0 : i32
    %c0_i32_1 = arith.constant 0 : i32
    return %c0_i32, %c0_i32_0 : i32, i32
  }
  func.func @transform_6(%arg0: i32) -> (i32, i32) {
    %c0_i32 = arith.constant 0 : i32
    %c0_i32_0 = arith.constant 0 : i32
    %c0_i32_1 = arith.constant 0 : i32
    return %c0_i32, %c0_i32_0 : i32, i32
  }
  func.func @transform_7(%arg0: i32) -> (i32, i32, i32) {
    %c0_i32 = arith.constant 0 : i32
    %c0_i32_0 = arith.constant 0 : i32
    %c0_i32_1 = arith.constant 0 : i32
    %c0_i32_2 = arith.constant 0 : i32
    return %c0_i32, %c0_i32_0, %c0_i32_1 : i32, i32, i32
  }
  func.func @transform_8(%arg0: i32) -> (i32, i32, i32) {
    %c0_i32 = arith.constant 0 : i32
    %c0_i32_0 = arith.constant 0 : i32
    %c0_i32_1 = arith.constant 0 : i32
    %c0_i32_2 = arith.constant 0 : i32
    return %c0_i32, %c0_i32_0, %c0_i32_1 : i32, i32, i32
  }
  func.func @transform_9(%arg0: i32) -> (i32, i32, i32) {
    %c0_i32 = arith.constant 0 : i32
    %c0_i32_0 = arith.constant 0 : i32
    %c0_i32_1 = arith.constant 0 : i32
    return %arg0, %c0_i32, %c0_i32_0 : i32, i32, i32
  }
  func.func @transform_10(%arg0: i32) -> (i32, i32, i32, i32) {
    %c0_i32 = arith.constant 0 : i32
    %c0_i32_0 = arith.constant 0 : i32
    %c0_i32_1 = arith.constant 0 : i32
    %c0_i32_2 = arith.constant 0 : i32
    return %arg0, %c0_i32, %c0_i32_0, %c0_i32_1 : i32, i32, i32, i32
  }
}

</mosaic_0001>

<llo_original>
// kernel: tpu_custom_call.1
$region0: #{tpu_custom_call.1}
  #allocation0 [shape = 'u32[]', space=smem, size = 0x4, offset = 0x4, fixed_abs, tag = 'smem constant byte address 0x4 - core index']
  #allocation1 [shape = 'u32[72,128]{1,0:T(1,128)}', space=vmem, size = 0x9000, scoped, tag = 'internal scratch']
  %s0 = inlined_call_operand.hbm [shape: f32[2,8,32], index: 0, kind: input, shape index: {}]
  %s1 = inlined_call_operand.hbm [shape: f32[32,32], index: 1, kind: input, shape index: {}]
  %s2 = inlined_call_operand.hbm [shape: f32[32,32], index: 2, kind: input, shape index: {}]
  %s3 = inlined_call_operand.vmem [shape: f32[1,32], index: 3, kind: input, shape index: {}]
  %s4 = inlined_call_operand.hbm [shape: f32[32,32], index: 4, kind: input, shape index: {}]
  %s5 = inlined_call_operand.hbm [shape: f32[32,32], index: 5, kind: input, shape index: {}]
  %s6 = inlined_call_operand.vmem [shape: f32[1,32], index: 6, kind: input, shape index: {}]
  %s7 = inlined_call_operand.vmem [shape: f32[4,1,32], index: 7, kind: input, shape index: {}]
  %s8 = inlined_call_operand.vmem [shape: f32[4,1,1], index: 8, kind: input, shape index: {}]
  %s9 = inlined_call_operand.hbm [shape: f32[2,8,32], index: 9, kind: output, shape index: {0}]
  %s10 = inlined_call_operand.hbm [shape: f32[2,4,8,8], index: 10, kind: output, shape index: {1}]
  %11 = xla_tuple %s9, %s10
  %s12 = sld [smem:[#allocation0]]
  $region97: #{tpu_custom_call.1} parent=0
    _
  %s14 = ssub.s32 1, %s12
  %s15 = scalar_select 0, %s14, %s12
  $region1: #{tpu_custom_call.1} parent=0
    #allocation2 [shape = 'u8[8192]{0}', space=vmem, size = 0x2000, scoped, tag = 'input window, operand 0']
    #allocation3 [shape = 's32[2]{0}', space=sflag, size = 0x8, scoped, tag = 'scoped memory for tpu_custom_call.1']
    #allocation4 [shape = 's32[2]{0}', space=sflag, size = 0x8, scoped, tag = 'scoped memory for tpu_custom_call.1']
    #allocation5 [shape = 'u8[16384]{0}', space=vmem, size = 0x4000, scoped, tag = 'input window, operand 1, single buffered']
    #allocation6 [shape = 's32[1]{0}', space=sflag, size = 0x4, scoped, tag = 'scoped memory for tpu_custom_call.1']
    #allocation7 [shape = 'u8[16384]{0}', space=vmem, size = 0x4000, scoped, tag = 'input window, operand 2, single buffered']
    #allocation8 [shape = 'u8[16384]{0}', space=vmem, size = 0x4000, scoped, tag = 'input window, operand 4, single buffered']
    #allocation9 [shape = 's32[1]{0}', space=sflag, size = 0x4, scoped, tag = 'scoped memory for tpu_custom_call.1']
    #allocation10 [shape = 'u8[16384]{0}', space=vmem, size = 0x4000, scoped, tag = 'input window, operand 5, single buffered']
    #allocation11 [shape = 'u8[8192]{0}', space=vmem, size = 0x2000, scoped, tag = 'output window, operand 0']
    #allocation12 [shape = 'u8[32768]{0}', space=vmem, size = 0x8000, scoped, tag = 'output window, operand 1']
    #allocation13 [shape = 's32[2]{0}', space=sflag, size = 0x8, scoped, tag = 'scoped memory for tpu_custom_call.1']
    %16 = vsyncpa [#allocation3], 0
    %s17 = scalar_lea.sflag [#allocation3], 1
    %18 = vsyncpa %s17, 0
    %19 = vsyncpa [#allocation6], 0
    %20 = vsyncpa [#allocation9], 0
    %21 = vsyncpa [#allocation4], 0
    %s22 = scalar_lea.sflag [#allocation4], 1
    %23 = vsyncpa %s22, 0
    %24 = vsyncpa [#allocation13], 0
    %s25 = scalar_lea.sflag [#allocation13], 1
    %26 = vsyncpa %s25, 0
    loop: start=0, step=1, limit=4
    $region2: #{tpu_custom_call.1} parent=1 // loop_pre_header
      _
    $region3: #{tpu_custom_call.1} parent=1 // loop_header
      %s28 = sphi 0, %s32
      %p29 = scmp.ge.s32.totalorder %s28, 4
      %s38 = sphi 0, %s40
      %s41 = sphi 0, %s38
      %s42 = sphi 0, %s41
      %s58 = sphi 0, %s42
      %s62 = sphi 0, %s62
      %s64 = sphi 0, %s62
      %s65 = sphi 0, %s64
      %s79 = sphi 0, %s65
      %s83 = sphi 0, %s83
      %s85 = sphi 0, %s83
      %s86 = sphi 0, %s85
      %s100 = sphi 0, %s86
      %s104 = sphi 0, %s104
      %s106 = sphi 0, %s104
      %s107 = sphi 0, %s106
      %s121 = sphi 0, %s107
      %s125 = sphi 0, %s125
      %s127 = sphi 0, %s125
      %s128 = sphi 0, %s127
      %s142 = sphi 0, %s128
      %s146 = sphi 0, %s146
      %s148 = sphi 0, %s146
      %s149 = sphi 0, %s148
      %s163 = sphi 0, %s149
      %s167 = sphi 0, %s167
      %s169 = sphi 0, %s167
      %s170 = sphi 0, %s169
      %s184 = sphi 0, %s170
      %s188 = sphi 0, %s188
      %s190 = sphi 0, %s188
      %s191 = sphi 0, %s190
      %s205 = sphi 0, %s191
      %s209 = sphi 0, %s209
      %s211 = sphi 0, %s209
      %s212 = sphi 0, %s211
      %s226 = sphi 0, %s212
      %s232 = sphi 0, %s234
      %s235 = sphi 0, %s232
      %s236 = sphi 0, %s235
      %s252 = sphi 0, %s236
      %s258 = sphi 0, %s260
      %s261 = sphi 0, %s258
      %s262 = sphi 0, %s261
      %s278 = sphi 0, %s262
    $region4: #{tpu_custom_call.1} parent=1 // loop_header_branch
      %31 = sbr.rel (%p29) target = $region8
    $region5: #{tpu_custom_call.1} parent=1 // loop_body
      %s33 = ssub.s32 %s28, 1
      %s34 = ssub.s32 %s28, 2
      %s35 = sadd.s32 %s28, 1
      %s36 = ssub.s32 %s28, %s35
      %p37 = scmp.eq.s32.totalorder %s36, 0
      %s39 = sadd.s32 %s38, 1
      %s40 = scalar_select %p37, %s38, %s39
      %p43 = pneg %p37
      %p44 = scmp.eq.s32.totalorder %s28, 1
      %p45 = por %p43, %p44
      %p46 = scmp.ne.s32.totalorder %s38, %s41
      %p47 = scmp.eq.s32.totalorder %s28, 0
      %p48 = por %p46, %p47
      %p49 = scmp.ne.s32.totalorder %s38, %s41
      %p50 = scmp.eq.s32.totalorder %s33, 1
      %p51 = por %p49, %p50
      %p52 = scmp.ne.s32.totalorder %s41, %s42
      %p53 = scmp.eq.s32.totalorder %s33, 0
      %p54 = por %p52, %p53
      %p55 = scmp.ne.s32.totalorder %s41, %s42
      %p56 = scmp.eq.s32.totalorder %s34, 1
      %p57 = por %p55, %p56
      %p59 = scmp.ne.s32.totalorder %s42, %s58
      %p60 = scmp.eq.s32.totalorder %s34, 0
      %p61 = por %p59, %p60
      %s63 = sadd.s32 %s62, 1
      %p66 = scmp.eq.s32.totalorder %s28, 1
      %p67 = scmp.ne.s32.totalorder %s62, %s64
      %p68 = scmp.eq.s32.totalorder %s28, 0
      %p69 = por %p67, %p68
      %p70 = scmp.ne.s32.totalorder %s62, %s64
      %p71 = scmp.eq.s32.totalorder %s33, 1
      %p72 = por %p70, %p71
      %p73 = scmp.ne.s32.totalorder %s64, %s65
      %p74 = scmp.eq.s32.totalorder %s33, 0
      %p75 = por %p73, %p74
      %p76 = scmp.ne.s32.totalorder %s64, %s65
      %p77 = scmp.eq.s32.totalorder %s34, 1
      %p78 = por %p76, %p77
      %p80 = scmp.ne.s32.totalorder %s65, %s79
      %p81 = scmp.eq.s32.totalorder %s34, 0
      %p82 = por %p80, %p81
      %s84 = sadd.s32 %s83, 1
      %p87 = scmp.eq.s32.totalorder %s28, 1
      %p88 = scmp.ne.s32.totalorder %s83, %s85
      %p89 = scmp.eq.s32.totalorder %s28, 0
      %p90 = por %p88, %p89
      %p91 = scmp.ne.s32.totalorder %s83, %s85
      %p92 = scmp.eq.s32.totalorder %s33, 1
      %p93 = por %p91, %p92
      %p94 = scmp.ne.s32.totalorder %s85, %s86
      %p95 = scmp.eq.s32.totalorder %s33, 0
      %p96 = por %p94, %p95
      %p97 = scmp.ne.s32.totalorder %s85, %s86
      %p98 = scmp.eq.s32.totalorder %s34, 1
      %p99 = por %p97, %p98
      %p101 = scmp.ne.s32.totalorder %s86, %s100
      %p102 = scmp.eq.s32.totalorder %s34, 0
      %p103 = por %p101, %p102
      %s105 = sadd.s32 %s104, 1
      %p108 = scmp.eq.s32.totalorder %s28, 1
      %p109 = scmp.ne.s32.totalorder %s104, %s106
      %p110 = scmp.eq.s32.totalorder %s28, 0
      %p111 = por %p109, %p110
      %p112 = scmp.ne.s32.totalorder %s104, %s106
      %p113 = scmp.eq.s32.totalorder %s33, 1
      %p114 = por %p112, %p113
      %p115 = scmp.ne.s32.totalorder %s106, %s107
      %p116 = scmp.eq.s32.totalorder %s33, 0
      %p117 = por %p115, %p116
      %p118 = scmp.ne.s32.totalorder %s106, %s107
      %p119 = scmp.eq.s32.totalorder %s34, 1
      %p120 = por %p118, %p119
      %p122 = scmp.ne.s32.totalorder %s107, %s121
      %p123 = scmp.eq.s32.totalorder %s34, 0
      %p124 = por %p122, %p123
      %s126 = sadd.s32 %s125, 1
      %p129 = scmp.eq.s32.totalorder %s28, 1
      %p130 = scmp.ne.s32.totalorder %s125, %s127
      %p131 = scmp.eq.s32.totalorder %s28, 0
      %p132 = por %p130, %p131
      %p133 = scmp.ne.s32.totalorder %s125, %s127
      %p134 = scmp.eq.s32.totalorder %s33, 1
      %p135 = por %p133, %p134
      %p136 = scmp.ne.s32.totalorder %s127, %s128
      %p137 = scmp.eq.s32.totalorder %s33, 0
      %p138 = por %p136, %p137
      %p139 = scmp.ne.s32.totalorder %s127, %s128
      %p140 = scmp.eq.s32.totalorder %s34, 1
      %p141 = por %p139, %p140
      %p143 = scmp.ne.s32.totalorder %s128, %s142
      %p144 = scmp.eq.s32.totalorder %s34, 0
      %p145 = por %p143, %p144
      %s147 = sadd.s32 %s146, 1
      %p150 = scmp.eq.s32.totalorder %s28, 1
      %p151 = scmp.ne.s32.totalorder %s146, %s148
      %p152 = scmp.eq.s32.totalorder %s28, 0
      %p153 = por %p151, %p152
      %p154 = scmp.ne.s32.totalorder %s146, %s148
      %p155 = scmp.eq.s32.totalorder %s33, 1
      %p156 = por %p154, %p155
      %p157 = scmp.ne.s32.totalorder %s148, %s149
      %p158 = scmp.eq.s32.totalorder %s33, 0
      %p159 = por %p157, %p158
      %p160 = scmp.ne.s32.totalorder %s148, %s149
      %p161 = scmp.eq.s32.totalorder %s34, 1
      %p162 = por %p160, %p161
      %p164 = scmp.ne.s32.totalorder %s149, %s163
      %p165 = scmp.eq.s32.totalorder %s34, 0
      %p166 = por %p164, %p165
      %s168 = sadd.s32 %s167, 1
      %p171 = scmp.eq.s32.totalorder %s28, 1
      %p172 = scmp.ne.s32.totalorder %s167, %s169
      %p173 = scmp.eq.s32.totalorder %s28, 0
      %p174 = por %p172, %p173
      %p175 = scmp.ne.s32.totalorder %s167, %s169
      %p176 = scmp.eq.s32.totalorder %s33, 1
      %p177 = por %p175, %p176
      %p178 = scmp.ne.s32.totalorder %s169, %s170
      %p179 = scmp.eq.s32.totalorder %s33, 0
      %p180 = por %p178, %p179
      %p181 = scmp.ne.s32.totalorder %s169, %s170
      %p182 = scmp.eq.s32.totalorder %s34, 1
      %p183 = por %p181, %p182
      %p185 = scmp.ne.s32.totalorder %s170, %s184
      %p186 = scmp.eq.s32.totalorder %s34, 0
      %p187 = por %p185, %p186
      %s189 = sadd.s32 %s188, 1
      %p192 = scmp.eq.s32.totalorder %s28, 1
      %p193 = scmp.ne.s32.totalorder %s188, %s190
      %p194 = scmp.eq.s32.totalorder %s28, 0
      %p195 = por %p193, %p194
      %p196 = scmp.ne.s32.totalorder %s188, %s190
      %p197 = scmp.eq.s32.totalorder %s33, 1
      %p198 = por %p196, %p197
      %p199 = scmp.ne.s32.totalorder %s190, %s191
      %p200 = scmp.eq.s32.totalorder %s33, 0
      %p201 = por %p199, %p200
      %p202 = scmp.ne.s32.totalorder %s190, %s191
      %p203 = scmp.eq.s32.totalorder %s34, 1
      %p204 = por %p202, %p203
      %p206 = scmp.ne.s32.totalorder %s191, %s205
      %p207 = scmp.eq.s32.totalorder %s34, 0
      %p208 = por %p206, %p207
      %s210 = sadd.s32 %s209, 1
      %p213 = scmp.eq.s32.totalorder %s28, 1
      %p214 = scmp.ne.s32.totalorder %s209, %s211
      %p215 = scmp.eq.s32.totalorder %s28, 0
      %p216 = por %p214, %p215
      %p217 = scmp.ne.s32.totalorder %s209, %s211
      %p218 = scmp.eq.s32.totalorder %s33, 1
      %p219 = por %p217, %p218
      %p220 = scmp.ne.s32.totalorder %s211, %s212
      %p221 = scmp.eq.s32.totalorder %s33, 0
      %p222 = por %p220, %p221
      %p223 = scmp.ne.s32.totalorder %s211, %s212
      %p224 = scmp.eq.s32.totalorder %s34, 1
      %p225 = por %p223, %p224
      %p227 = scmp.ne.s32.totalorder %s212, %s226
      %p228 = scmp.eq.s32.totalorder %s34, 0
      %p229 = por %p227, %p228
      %s230 = ssub.s32 %s28, %s35
      %p231 = scmp.eq.s32.totalorder %s230, 0
      %s233 = sadd.s32 %s232, 1
      %s234 = scalar_select %p231, %s232, %s233
      %p237 = pneg %p231
      %p238 = scmp.eq.s32.totalorder %s28, 1
      %p239 = por %p237, %p238
      %p240 = scmp.ne.s32.totalorder %s232, %s235
      %p241 = scmp.eq.s32.totalorder %s28, 0
      %p242 = por %p240, %p241
      %p243 = scmp.ne.s32.totalorder %s232, %s235
      %p244 = scmp.eq.s32.totalorder %s33, 1
      %p245 = por %p243, %p244
      %p246 = scmp.ne.s32.totalorder %s235, %s236
      %p247 = scmp.eq.s32.totalorder %s33, 0
      %p248 = por %p246, %p247
      %p249 = scmp.ne.s32.totalorder %s235, %s236
      %p250 = scmp.eq.s32.totalorder %s34, 1
      %p251 = por %p249, %p250
      %p253 = scmp.ne.s32.totalorder %s236, %s252
      %p254 = scmp.eq.s32.totalorder %s34, 0
      %p255 = por %p253, %p254
      %s256 = ssub.s32 %s28, %s35
      %p257 = scmp.eq.s32.totalorder %s256, 0
      %s259 = sadd.s32 %s258, 1
      %s260 = scalar_select %p257, %s258, %s259
      %p263 = pneg %p257
      %p264 = scmp.eq.s32.totalorder %s28, 1
      %p265 = por %p263, %p264
      %p266 = scmp.ne.s32.totalorder %s258, %s261
      %p267 = scmp.eq.s32.totalorder %s28, 0
      %p268 = por %p266, %p267
      %p269 = scmp.ne.s32.totalorder %s258, %s261
      %p270 = scmp.eq.s32.totalorder %s33, 1
      %p271 = por %p269, %p270
      %p272 = scmp.ne.s32.totalorder %s261, %s262
      %p273 = scmp.eq.s32.totalorder %s33, 0
      %p274 = por %p272, %p273
      %p275 = scmp.ne.s32.totalorder %s261, %s262
      %p276 = scmp.eq.s32.totalorder %s34, 1
      %p277 = por %p275, %p276
      %p279 = scmp.ne.s32.totalorder %s262, %s278
      %p280 = scmp.eq.s32.totalorder %s34, 0
      %p281 = por %p279, %p280
      %p282 = scmp.le.s32.totalorder 1, %s28
      %p283 = scmp.lt.s32.totalorder %s28, 3
      %p284 = pnand %p282, %p283
      %p285 = pneg %p284
      // Predicated region
      $region9: #{tpu_custom_call.1} parent=5 // pred_check
        _
      $region10: #{tpu_custom_call.1} parent=5 // pred_check_branch
        %287 = sbr.rel (%p284) target = $region12
      $region11: #{tpu_custom_call.1} parent=5 // pred_region
        %s288 = ssub.s32 %s28, 1
        // Predicated region
        $region13: #{tpu_custom_call.1} parent=11 // pred_check
          %p289 = pneg %p75
        $region14: #{tpu_custom_call.1} parent=11 // pred_check_branch
          %291 = sbr.rel (%p289) target = $region16
        $region15: #{tpu_custom_call.1} parent=11 // pred_region
          %293 = vsyncadd [#allocation6], 0
          %s294 = sshll.u32 %s1, 4
          %s295 = int_to_ptr.hbm [resolvable:$true] %s294
          %s296 = sshll.u32 [#allocation5], 4
          %s297 = int_to_ptr.vmem [resolvable:$true] %s296
          %302 = dma.hbm_to_vmem [thread:$0]  %s295, 512, %s297, [#allocation6], 128, 128, 8
        $region16: #{tpu_custom_call.1} parent=11 // pred_fallthru
          _
        // Predicated region
        $region17: #{tpu_custom_call.1} parent=11 // pred_check
          %p303 = pneg %p96
        $region18: #{tpu_custom_call.1} parent=11 // pred_check_branch
          %305 = sbr.rel (%p303) target = $region20
        $region19: #{tpu_custom_call.1} parent=11 // pred_region
          %307 = vsyncadd [#allocation6], 0
          %s308 = sshll.u32 %s2, 4
          %s309 = int_to_ptr.hbm [resolvable:$true] %s308
          %s310 = sshll.u32 [#allocation7], 4
          %s311 = int_to_ptr.vmem [resolvable:$true] %s310
          %316 = dma.hbm_to_vmem [thread:$0]  %s309, 512, %s311, [#allocation6], 128, 128, 8
        $region20: #{tpu_custom_call.1} parent=11 // pred_fallthru
          _
        // Predicated region
        $region21: #{tpu_custom_call.1} parent=11 // pred_check
          %p317 = pneg %p117
        $region22: #{tpu_custom_call.1} parent=11 // pred_check_branch
          %319 = sbr.rel (%p317) target = $region24
        $region23: #{tpu_custom_call.1} parent=11 // pred_region
          _
        $region24: #{tpu_custom_call.1} parent=11 // pred_fallthru
          _
        // Predicated region
        $region25: #{tpu_custom_call.1} parent=11 // pred_check
          %p320 = pneg %p138
        $region26: #{tpu_custom_call.1} parent=11 // pred_check_branch
          %322 = sbr.rel (%p320) target = $region28
        $region27: #{tpu_custom_call.1} parent=11 // pred_region
          %324 = vsyncadd [#allocation9], 0
          %s325 = sshll.u32 %s4, 4
          %s326 = int_to_ptr.hbm [resolvable:$true] %s325
          %s327 = sshll.u32 [#allocation8], 4
          %s328 = int_to_ptr.vmem [resolvable:$true] %s327
          %333 = dma.hbm_to_vmem [thread:$0]  %s326, 512, %s328, [#allocation9], 128, 128, 8
        $region28: #{tpu_custom_call.1} parent=11 // pred_fallthru
          _
        // Predicated region
        $region29: #{tpu_custom_call.1} parent=11 // pred_check
          %p334 = pneg %p159
        $region30: #{tpu_custom_call.1} parent=11 // pred_check_branch
          %336 = sbr.rel (%p334) target = $region32
        $region31: #{tpu_custom_call.1} parent=11 // pred_region
          %338 = vsyncadd [#allocation9], 0
          %s339 = sshll.u32 %s5, 4
          %s340 = int_to_ptr.hbm [resolvable:$true] %s339
          %s341 = sshll.u32 [#allocation10], 4
          %s342 = int_to_ptr.vmem [resolvable:$true] %s341
          %347 = dma.hbm_to_vmem [thread:$0]  %s340, 512, %s342, [#allocation9], 128, 128, 8
        $region32: #{tpu_custom_call.1} parent=11 // pred_fallthru
          _
        // Predicated region
        $region33: #{tpu_custom_call.1} parent=11 // pred_check
          %p348 = pneg %p180
        $region34: #{tpu_custom_call.1} parent=11 // pred_check_branch
          %350 = sbr.rel (%p348) target = $region36
        $region35: #{tpu_custom_call.1} parent=11 // pred_region
          _
        $region36: #{tpu_custom_call.1} parent=11 // pred_fallthru
          _
        // Predicated region
        $region37: #{tpu_custom_call.1} parent=11 // pred_check
          %p351 = pneg %p201
        $region38: #{tpu_custom_call.1} parent=11 // pred_check_branch
          %353 = sbr.rel (%p351) target = $region40
        $region39: #{tpu_custom_call.1} parent=11 // pred_region
          _
        $region40: #{tpu_custom_call.1} parent=11 // pred_fallthru
          _
        // Predicated region
        $region41: #{tpu_custom_call.1} parent=11 // pred_check
          %p354 = pneg %p222
        $region42: #{tpu_custom_call.1} parent=11 // pred_check_branch
          %356 = sbr.rel (%p354) target = $region44
        $region43: #{tpu_custom_call.1} parent=11 // pred_region
          _
        $region44: #{tpu_custom_call.1} parent=11 // pred_fallthru
          _
      $region12: #{tpu_custom_call.1} parent=5 // pred_fallthru
        _
      %p357 = scmp.lt.s32.totalorder %s28, 2
      // Predicated region
      $region45: #{tpu_custom_call.1} parent=5 // pred_check
        %p358 = pneg %p357
      $region46: #{tpu_custom_call.1} parent=5 // pred_check_branch
        %360 = sbr.rel (%p358) target = $region48
      $region47: #{tpu_custom_call.1} parent=5 // pred_region
        // Predicated region
        $region49: #{tpu_custom_call.1} parent=47 // pred_check
          %p361 = pneg %p48
        $region50: #{tpu_custom_call.1} parent=47 // pred_check_branch
          %363 = sbr.rel (%p361) target = $region52
        $region51: #{tpu_custom_call.1} parent=47 // pred_region
          %s364 = sand.u32 %s38, 1
          %s365 = scalar_lea.sflag [#allocation3], %s364
          %s366 = sand.u32 %s38, 1
          %s367 = smul.addr %s366, 8
          %s368 = scalar_lea.vmem [#allocation2], %s367
          %370 = vsyncadd %s365, 0
          %s371 = smul.addr %s28, 8
          %s372 = scalar_lea.hbm %s0, %s371
          %s374 = sshll.u32 %s372, 4
          %s375 = int_to_ptr.hbm [resolvable:$true] %s374
          %s376 = sshll.u32 %s368, 4
          %s377 = int_to_ptr.vmem [resolvable:$true] %s376
          %379 = dma.hbm_to_vmem [thread:$0]  %s375, 128, %s377, %s365
        $region52: #{tpu_custom_call.1} parent=47 // pred_fallthru
          _
      $region48: #{tpu_custom_call.1} parent=5 // pred_fallthru
        _
      %p380 = scmp.le.s32.totalorder 1, %s28
      %p381 = scmp.lt.s32.totalorder %s28, 3
      %p382 = pnand %p380, %p381
      %p383 = pneg %p382
      // Predicated region
      $region53: #{tpu_custom_call.1} parent=5 // pred_check
        _
      $region54: #{tpu_custom_call.1} parent=5 // pred_check_branch
        %385 = sbr.rel (%p382) target = $region56
      $region55: #{tpu_custom_call.1} parent=5 // pred_region
        %s386 = ssub.s32 %s28, 1
        %s387 = sand.u32 %s41, 1
        %s388 = scalar_lea.sflag [#allocation3], %s387
        %s389 = sand.u32 %s41, 1
        %s390 = smul.addr %s389, 8
        %s391 = scalar_lea.vmem [#allocation2], %s390
        // Predicated region
        $region57: #{tpu_custom_call.1} parent=55 // pred_check
          %p392 = pneg %p54
        $region58: #{tpu_custom_call.1} parent=55 // pred_check_branch
          %394 = sbr.rel (%p392) target = $region60
        $region59: #{tpu_custom_call.1} parent=55 // pred_region
          %396 = dma.done %s388, 128
        $region60: #{tpu_custom_call.1} parent=55 // pred_fallthru
          _
        // Predicated region
        $region61: #{tpu_custom_call.1} parent=55 // pred_check
          %p397 = pneg %p75
        $region62: #{tpu_custom_call.1} parent=55 // pred_check_branch
          %399 = sbr.rel (%p397) target = $region64
        $region63: #{tpu_custom_call.1} parent=55 // pred_region
          %401 = dma.done [#allocation6], 512
        $region64: #{tpu_custom_call.1} parent=55 // pred_fallthru
          _
        // Predicated region
        $region65: #{tpu_custom_call.1} parent=55 // pred_check
          %p402 = pneg %p96
        $region66: #{tpu_custom_call.1} parent=55 // pred_check_branch
          %404 = sbr.rel (%p402) target = $region68
        $region67: #{tpu_custom_call.1} parent=55 // pred_region
          %406 = dma.done [#allocation6], 512
        $region68: #{tpu_custom_call.1} parent=55 // pred_fallthru
          _
        // Predicated region
        $region69: #{tpu_custom_call.1} parent=55 // pred_check
          %p407 = pneg %p138
        $region70: #{tpu_custom_call.1} parent=55 // pred_check_branch
          %409 = sbr.rel (%p407) target = $region72
        $region71: #{tpu_custom_call.1} parent=55 // pred_region
          %411 = dma.done [#allocation9], 512
        $region72: #{tpu_custom_call.1} parent=55 // pred_fallthru
          _
        // Predicated region
        $region73: #{tpu_custom_call.1} parent=55 // pred_check
          %p412 = pneg %p159
        $region74: #{tpu_custom_call.1} parent=55 // pred_check_branch
          %414 = sbr.rel (%p412) target = $region76
        $region75: #{tpu_custom_call.1} parent=55 // pred_region
          %416 = dma.done [#allocation9], 512
        $region76: #{tpu_custom_call.1} parent=55 // pred_fallthru
          _
        %s417 = sand.u32 %s41, 1
        %s418 = scalar_lea.sflag [#allocation3], %s417
        %s419 = sand.u32 %s41, 1
        %s420 = smul.addr %s419, 8
        %s421 = scalar_lea.vmem [#allocation2], %s420
        %p422 = pneg %p54
        %p423 = pneg %p51
        %p424 = pneg %p75
        %p425 = pneg %p72
        %p426 = pneg %p96
        %p427 = pneg %p93
        %p428 = pneg %p117
        %p429 = pneg %p114
        %p430 = pneg %p138
        %p431 = pneg %p135
        %p432 = pneg %p159
        %p433 = pneg %p156
        %p434 = pneg %p180
        %p435 = pneg %p177
        %p436 = pneg %p201
        %p437 = pneg %p198
        %p438 = pneg %p222
        %p439 = pneg %p219
        %p440 = pneg %p248
        %p441 = pneg %p245
        %s442 = sand.u32 %s235, 1
        %s443 = scalar_lea.sflag [#allocation4], %s442
        %s444 = sand.u32 %s235, 1
        %s445 = smul.addr %s444, 8
        %s446 = scalar_lea.vmem [#allocation11], %s445
        %p447 = pneg %p274
        %p448 = pneg %p271
        %s449 = sand.u32 %s261, 1
        %s450 = scalar_lea.sflag [#allocation13], %s449
        %s451 = sand.u32 %s261, 1
        %s452 = smul.addr %s451, 32
        %s453 = scalar_lea.vmem [#allocation12], %s452
        %v454 = vld [vmem:[%s391] sm:$0xff]
        %v455 = vlaneseq
        %v456 = vshrl.u32 %v455, 7
        %v457 = vadd.s32 %v456, 8
        %v458 = vadd.s32 %v456, 16
        %v459 = vadd.s32 %v456, 24
        %v460 = vlaneseq
        %v461 = vand.u32 %v460, 127
        %v462 = vsub.s32 %v456, %v461
        %v463 = vsub.s32 %v457, %v461
        %v464 = vsub.s32 %v458, %v461
        %v465 = vsub.s32 %v459, %v461
        %vm466 = vcmp.lt.s32.totalorder %v462, 0
        %v467 = vsub.s32 0, %v462
        %v468 = vsel %vm466, %v467, %v462
        %vm469 = vcmp.lt.s32.totalorder %v463, 0
        %v470 = vsub.s32 0, %v463
        %v471 = vsel %vm469, %v470, %v463
        %vm472 = vcmp.lt.s32.totalorder %v464, 0
        %v473 = vsub.s32 0, %v464
        %v474 = vsel %vm472, %v473, %v464
        %vm475 = vcmp.lt.s32.totalorder %v465, 0
        %v476 = vsub.s32 0, %v465
        %v477 = vsel %vm475, %v476, %v465
        %vm478 = vcmp.le.s32.totalorder %v468, 2
        %vm479 = vcmp.le.s32.totalorder %v471, 2
        %vm480 = vcmp.le.s32.totalorder %v474, 2
        %vm481 = vcmp.le.s32.totalorder %v477, 2
        %v483 = vrot.slane %v454, 1
        %v484 = vrot.slane %v454, 2
        %v485 = vrot.slane %v454, 3
        %v486 = vrot.slane %v454, 4
        %v487 = vrot.slane %v454, 5
        %v488 = vrot.slane %v454, 6
        %v489 = vrot.slane %v454, 7
        %v490 = vsel %vm478, 1, 0
        %v491 = vsel %vm479, 1, 0
        %v492 = vsel %vm480, 1, 0
        %v493 = vsel %vm481, 1, 0
        %vm494 = vcmp.eq.s32.totalorder %v490, 1
        %vm495 = vcmp.eq.s32.totalorder %v491, 1
        %vm496 = vcmp.eq.s32.totalorder %v492, 1
        %vm497 = vcmp.eq.s32.totalorder %v493, 1
        %v498 = vperm.slane %v454, 0
        %v499 = vperm.slane %v483, 0
        %v500 = vperm.slane %v484, 0
        %v501 = vperm.slane %v485, 0
        %v502 = vperm.slane %v486, 0
        %v503 = vperm.slane %v487, 0
        %v504 = vperm.slane %v488, 0
        %v505 = vperm.slane %v489, 0
        %v514 = vsel %vm494, %v498, -inf
        %v515 = vsel %vm495, %v498, -inf
        %v516 = vsel %vm496, %v498, -inf
        %v517 = vsel %vm497, %v498, -inf
        %v518 = vsel %vm494, %v499, -inf
        %v519 = vsel %vm495, %v499, -inf
        %v520 = vsel %vm496, %v499, -inf
        %v521 = vsel %vm497, %v499, -inf
        %v522 = vsel %vm494, %v500, -inf
        %v523 = vsel %vm495, %v500, -inf
        %v524 = vsel %vm496, %v500, -inf
        %v525 = vsel %vm497, %v500, -inf
        %v526 = vsel %vm494, %v501, -inf
        %v527 = vsel %vm495, %v501, -inf
        %v528 = vsel %vm496, %v501, -inf
        %v529 = vsel %vm497, %v501, -inf
        %v530 = vsel %vm494, %v502, -inf
        %v531 = vsel %vm495, %v502, -inf
        %v532 = vsel %vm496, %v502, -inf
        %v533 = vsel %vm497, %v502, -inf
        %v534 = vsel %vm494, %v503, -inf
        %v535 = vsel %vm495, %v503, -inf
        %v536 = vsel %vm496, %v503, -inf
        %v537 = vsel %vm497, %v503, -inf
        %v538 = vsel %vm494, %v504, -inf
        %v539 = vsel %vm495, %v504, -inf
        %v540 = vsel %vm496, %v504, -inf
        %v541 = vsel %vm497, %v504, -inf
        %v542 = vsel %vm494, %v505, -inf
        %v543 = vsel %vm495, %v505, -inf
        %v544 = vsel %vm496, %v505, -inf
        %v545 = vsel %vm497, %v505, -inf
        %vm546 = vcmask 261120
        %v547 = vsel %vm546, %v514, -inf
        %548 = vmax.xlane.f32.xlu0 %v547
        %v549 = vpop.xlane.xlu0 %548
        %v550 = vsel %vm546, %v515, -inf
        %551 = vmax.xlane.f32.xlu0 %v550
        %v552 = vpop.xlane.xlu0 %551
        %v553 = vsel %vm546, %v516, -inf
        %554 = vmax.xlane.f32.xlu0 %v553
        %v555 = vpop.xlane.xlu0 %554
        %v556 = vsel %vm546, %v517, -inf
        %557 = vmax.xlane.f32.xlu0 %v556
        %v558 = vpop.xlane.xlu0 %557
        %v559 = vsel %vm546, %v518, -inf
        %560 = vmax.xlane.f32.xlu0 %v559
        %v561 = vpop.xlane.xlu0 %560
        %v562 = vsel %vm546, %v519, -inf
        %563 = vmax.xlane.f32.xlu0 %v562
        %v564 = vpop.xlane.xlu0 %563
        %v565 = vsel %vm546, %v520, -inf
        %566 = vmax.xlane.f32.xlu0 %v565
        %v567 = vpop.xlane.xlu0 %566
        %v568 = vsel %vm546, %v521, -inf
        %569 = vmax.xlane.f32.xlu0 %v568
        %v570 = vpop.xlane.xlu0 %569
        %v571 = vsel %vm546, %v522, -inf
        %572 = vmax.xlane.f32.xlu0 %v571
        %v573 = vpop.xlane.xlu0 %572
        %v574 = vsel %vm546, %v523, -inf
        %575 = vmax.xlane.f32.xlu0 %v574
        %v576 = vpop.xlane.xlu0 %575
        %v577 = vsel %vm546, %v524, -inf
        %578 = vmax.xlane.f32.xlu0 %v577
        %v579 = vpop.xlane.xlu0 %578
        %v580 = vsel %vm546, %v525, -inf
        %581 = vmax.xlane.f32.xlu0 %v580
        %v582 = vpop.xlane.xlu0 %581
        %v583 = vsel %vm546, %v526, -inf
        %584 = vmax.xlane.f32.xlu0 %v583
        %v585 = vpop.xlane.xlu0 %584
        %v586 = vsel %vm546, %v527, -inf
        %587 = vmax.xlane.f32.xlu0 %v586
        %v588 = vpop.xlane.xlu0 %587
        %v589 = vsel %vm546, %v528, -inf
        %590 = vmax.xlane.f32.xlu0 %v589
        %v591 = vpop.xlane.xlu0 %590
        %v592 = vsel %vm546, %v529, -inf
        %593 = vmax.xlane.f32.xlu0 %v592
        %v594 = vpop.xlane.xlu0 %593
        %v595 = vsel %vm546, %v530, -inf
        %596 = vmax.xlane.f32.xlu0 %v595
        %v597 = vpop.xlane.xlu0 %596
        %v598 = vsel %vm546, %v531, -inf
        %599 = vmax.xlane.f32.xlu0 %v598
        %v600 = vpop.xlane.xlu0 %599
        %v601 = vsel %vm546, %v532, -inf
        %602 = vmax.xlane.f32.xlu0 %v601
        %v603 = vpop.xlane.xlu0 %602
        %v604 = vsel %vm546, %v533, -inf
        %605 = vmax.xlane.f32.xlu0 %v604
        %v606 = vpop.xlane.xlu0 %605
        %v607 = vsel %vm546, %v534, -inf
        %608 = vmax.xlane.f32.xlu0 %v607
        %v609 = vpop.xlane.xlu0 %608
        %v610 = vsel %vm546, %v535, -inf
        %611 = vmax.xlane.f32.xlu0 %v610
        %v612 = vpop.xlane.xlu0 %611
        %v613 = vsel %vm546, %v536, -inf
        %614 = vmax.xlane.f32.xlu0 %v613
        %v615 = vpop.xlane.xlu0 %614
        %v616 = vsel %vm546, %v537, -inf
        %617 = vmax.xlane.f32.xlu0 %v616
        %v618 = vpop.xlane.xlu0 %617
        %v619 = vsel %vm546, %v538, -inf
        %620 = vmax.xlane.f32.xlu0 %v619
        %v621 = vpop.xlane.xlu0 %620
        %v622 = vsel %vm546, %v539, -inf
        %623 = vmax.xlane.f32.xlu0 %v622
        %v624 = vpop.xlane.xlu0 %623
        %v625 = vsel %vm546, %v540, -inf
        %626 = vmax.xlane.f32.xlu0 %v625
        %v627 = vpop.xlane.xlu0 %626
        %v628 = vsel %vm546, %v541, -inf
        %629 = vmax.xlane.f32.xlu0 %v628
        %v630 = vpop.xlane.xlu0 %629
        %v631 = vsel %vm546, %v542, -inf
        %632 = vmax.xlane.f32.xlu0 %v631
        %v633 = vpop.xlane.xlu0 %632
        %v634 = vsel %vm546, %v543, -inf
        %635 = vmax.xlane.f32.xlu0 %v634
        %v636 = vpop.xlane.xlu0 %635
        %v637 = vsel %vm546, %v544, -inf
        %638 = vmax.xlane.f32.xlu0 %v637
        %v639 = vpop.xlane.xlu0 %638
        %v640 = vsel %vm546, %v545, -inf
        %641 = vmax.xlane.f32.xlu0 %v640
        %v642 = vpop.xlane.xlu0 %641
        %v675 = vperm.slane %v549, %v461
        %v676 = vadd.s32 %v461, 4294967288
        %v677 = vperm.slane %v552, %v676
        %vm678 = vcmask 130112
        %v679 = vsel %vm678, %v677, %v675
        %v680 = vadd.s32 %v461, 4294967280
        %v681 = vperm.slane %v555, %v680
        %vm682 = vcmask 195712
        %v683 = vsel %vm682, %v681, %v679
        %v684 = vadd.s32 %v461, 4294967272
        %v685 = vperm.slane %v558, %v684
        %vm686 = vcmask 261312
        %v687 = vsel %vm686, %v685, %v683
        %v688 = vperm.slane %v561, %v461
        %v689 = vperm.slane %v564, %v676
        %v690 = vsel %vm678, %v689, %v688
        %v691 = vperm.slane %v567, %v680
        %v692 = vsel %vm682, %v691, %v690
        %v693 = vperm.slane %v570, %v684
        %v694 = vsel %vm686, %v693, %v692
        %v695 = vperm.slane %v573, %v461
        %v696 = vperm.slane %v576, %v676
        %v697 = vsel %vm678, %v696, %v695
        %v698 = vperm.slane %v579, %v680
        %v699 = vsel %vm682, %v698, %v697
        %v700 = vperm.slane %v582, %v684
        %v701 = vsel %vm686, %v700, %v699
        %v702 = vperm.slane %v585, %v461
        %v703 = vperm.slane %v588, %v676
        %v704 = vsel %vm678, %v703, %v702
        %v705 = vperm.slane %v591, %v680
        %v706 = vsel %vm682, %v705, %v704
        %v707 = vperm.slane %v594, %v684
        %v708 = vsel %vm686, %v707, %v706
        %v709 = vperm.slane %v597, %v461
        %v710 = vperm.slane %v600, %v676
        %v711 = vsel %vm678, %v710, %v709
        %v712 = vperm.slane %v603, %v680
        %v713 = vsel %vm682, %v712, %v711
        %v714 = vperm.slane %v606, %v684
        %v715 = vsel %vm686, %v714, %v713
        %v716 = vperm.slane %v609, %v461
        %v717 = vperm.slane %v612, %v676
        %v718 = vsel %vm678, %v717, %v716
        %v719 = vperm.slane %v615, %v680
        %v720 = vsel %vm682, %v719, %v718
        %v721 = vperm.slane %v618, %v684
        %v722 = vsel %vm686, %v721, %v720
        %v723 = vperm.slane %v621, %v461
        %v724 = vperm.slane %v624, %v676
        %v725 = vsel %vm678, %v724, %v723
        %v726 = vperm.slane %v627, %v680
        %v727 = vsel %vm682, %v726, %v725
        %v728 = vperm.slane %v630, %v684
        %v729 = vsel %vm686, %v728, %v727
        %v730 = vperm.slane %v633, %v461
        %v731 = vperm.slane %v636, %v676
        %v732 = vsel %vm678, %v731, %v730
        %v733 = vperm.slane %v639, %v680
        %v734 = vsel %vm682, %v733, %v732
        %v735 = vperm.slane %v642, %v684
        %v736 = vsel %vm686, %v735, %v734
        %vm737 = vcmask 1041409
        %v738 = vsel %vm737, %v694, %v687
        %vm739 = vcmask 1042434
        %v740 = vsel %vm739, %v701, %v738
        %vm741 = vcmask 1043459
        %v742 = vsel %vm741, %v708, %v740
        %vm743 = vcmask 1044484
        %v744 = vsel %vm743, %v715, %v742
        %vm745 = vcmask 1045509
        %v746 = vsel %vm745, %v722, %v744
        %vm747 = vcmask 1046534
        %v748 = vsel %vm747, %v729, %v746
        %vm749 = vcmask 1047559
        %v750 = vsel %vm749, %v736, %v748
        %752 = vst.msk [vmem:[%s446] sm:$0xff] %vm546, %v750
        %v753 = vld [vmem:[#allocation5] sm:$0xff]
        %v754 = vld [vmem:[#allocation5 + $0x8] sm:$0xff]
        %v755 = vld [vmem:[#allocation5 + $0x10] sm:$0xff]
        %v756 = vld [vmem:[#allocation5 + $0x18] sm:$0xff]
        %v757 = vld [vmem:[#allocation7] sm:$0xff]
        %v758 = vld [vmem:[#allocation7 + $0x8] sm:$0xff]
        %v759 = vld [vmem:[#allocation7 + $0x10] sm:$0xff]
        %v760 = vld [vmem:[#allocation7 + $0x18] sm:$0xff]
        %v761 = vsel %vm546, %v454, 0
        %763 = vmatpush.msra.mxu0 0.0
        %764 = vmatpush.msra.mxu0 0.0
        %765 = vmatpush.msra.mxu0 0.0
        %766 = vmatpush.msra.mxu0 0.0
        %767 = vmatpush.msra.mxu0 0.0
        %768 = vmatpush.msra.mxu0 0.0
        %769 = vmatpush.msra.mxu0 0.0
        %770 = vmatpush.msra.mxu0 0.0
        %771 = vmatpush.msra.mxu0 0.0
        %772 = vmatpush.msra.mxu0 0.0
        %773 = vmatpush.msra.mxu0 0.0
        %774 = vmatpush.msra.mxu0 0.0
        %775 = vmatpush.msra.mxu0 %v760
        %776 = vmatpush.msra.mxu0 %v759
        %777 = vmatpush.msra.mxu0 %v758
        %778 = vmatpush.msra.mxu0 %v757
        %779 = vmatmul.f32.gmra.mxu0 %v761
        %v780 = vpop.f32.mrf.mxu0
        %v781 = vadd.f32 0.0, %v780
        %782 = vdwg.mxu0
        %v783 = vsel %vm546, %v750, 0
        %785 = vmatpush.msra.mxu0 0.0
        %786 = vmatpush.msra.mxu0 0.0
        %787 = vmatpush.msra.mxu0 0.0
        %788 = vmatpush.msra.mxu0 0.0
        %789 = vmatpush.msra.mxu0 0.0
        %790 = vmatpush.msra.mxu0 0.0
        %791 = vmatpush.msra.mxu0 0.0
        %792 = vmatpush.msra.mxu0 0.0
        %793 = vmatpush.msra.mxu0 0.0
        %794 = vmatpush.msra.mxu0 0.0
        %795 = vmatpush.msra.mxu0 0.0
        %796 = vmatpush.msra.mxu0 0.0
        %797 = vmatpush.msra.mxu0 %v756
        %798 = vmatpush.msra.mxu0 %v755
        %799 = vmatpush.msra.mxu0 %v754
        %800 = vmatpush.msra.mxu0 %v753
        %801 = vmatmul.f32.gmra.mxu0 %v783
        %v802 = vpop.f32.mrf.mxu0
        %v803 = vadd.f32 %v781, %v802
        %804 = vdwg.mxu0
        %v805 = vld [vmem:[%s3] sm:$0x1]
        %v807 = vperm.slane %v805, 0
        %v809 = vadd.f32 %v803, %v807
        %v810 = vld [vmem:[#allocation8] sm:$0xff]
        %v811 = vld [vmem:[#allocation8 + $0x8] sm:$0xff]
        %v812 = vld [vmem:[#allocation8 + $0x10] sm:$0xff]
        %v813 = vld [vmem:[#allocation8 + $0x18] sm:$0xff]
        %v814 = vld [vmem:[#allocation10] sm:$0xff]
        %v815 = vld [vmem:[#allocation10 + $0x8] sm:$0xff]
        %v816 = vld [vmem:[#allocation10 + $0x10] sm:$0xff]
        %v817 = vld [vmem:[#allocation10 + $0x18] sm:$0xff]
        %818 = vmatpush.msra.mxu0 0.0
        %819 = vmatpush.msra.mxu0 0.0
        %820 = vmatpush.msra.mxu0 0.0
        %821 = vmatpush.msra.mxu0 0.0
        %822 = vmatpush.msra.mxu0 0.0
        %823 = vmatpush.msra.mxu0 0.0
        %824 = vmatpush.msra.mxu0 0.0
        %825 = vmatpush.msra.mxu0 0.0
        %826 = vmatpush.msra.mxu0 0.0
        %827 = vmatpush.msra.mxu0 0.0
        %828 = vmatpush.msra.mxu0 0.0
        %829 = vmatpush.msra.mxu0 0.0
        %830 = vmatpush.msra.mxu0 %v817
        %831 = vmatpush.msra.mxu0 %v816
        %832 = vmatpush.msra.mxu0 %v815
        %833 = vmatpush.msra.mxu0 %v814
        %834 = vmatmul.f32.gmra.mxu0 %v761
        %v835 = vpop.f32.mrf.mxu0
        %v836 = vadd.f32 0.0, %v835
        %837 = vdwg.mxu0
        %838 = vmatpush.msra.mxu0 0.0
        %839 = vmatpush.msra.mxu0 0.0
        %840 = vmatpush.msra.mxu0 0.0
        %841 = vmatpush.msra.mxu0 0.0
        %842 = vmatpush.msra.mxu0 0.0
        %843 = vmatpush.msra.mxu0 0.0
        %844 = vmatpush.msra.mxu0 0.0
        %845 = vmatpush.msra.mxu0 0.0
        %846 = vmatpush.msra.mxu0 0.0
        %847 = vmatpush.msra.mxu0 0.0
        %848 = vmatpush.msra.mxu0 0.0
        %849 = vmatpush.msra.mxu0 0.0
        %850 = vmatpush.msra.mxu0 %v813
        %851 = vmatpush.msra.mxu0 %v812
        %852 = vmatpush.msra.mxu0 %v811
        %853 = vmatpush.msra.mxu0 %v810
        %854 = vmatmul.f32.gmra.mxu0 %v783
        %v855 = vpop.f32.mrf.mxu0
        %v856 = vadd.f32 %v836, %v855
        %857 = vdwg.mxu0
        %v858 = vld [vmem:[%s6] sm:$0x1]
        %v860 = vperm.slane %v858, 0
        %v862 = vadd.f32 %v856, %v860
        %v864 = vrot.slane %v862, 1
        %v865 = vrot.slane %v862, 2
        %v866 = vrot.slane %v862, 3
        %v867 = vrot.slane %v862, 4
        %v868 = vrot.slane %v862, 5
        %v869 = vrot.slane %v862, 6
        %v870 = vrot.slane %v862, 7
        %v871 = vperm.slane %v862, 0
        %v872 = vperm.slane %v864, 0
        %v873 = vperm.slane %v865, 0
        %v874 = vperm.slane %v866, 0
        %v875 = vperm.slane %v867, 0
        %v876 = vperm.slane %v868, 0
        %v877 = vperm.slane %v869, 0
        %v878 = vperm.slane %v870, 0
        %v887 = vsub.f32 %v809, %v871
        %v888 = vsub.f32 %v809, %v872
        %v889 = vsub.f32 %v809, %v873
        %v890 = vsub.f32 %v809, %v874
        %v891 = vsub.f32 %v809, %v875
        %v892 = vsub.f32 %v809, %v876
        %v893 = vsub.f32 %v809, %v877
        %v894 = vsub.f32 %v809, %v878
        %v895 = vand.u32 2147483647, %v887
        %v896 = vand.u32 2147483647, %v888
        %v897 = vand.u32 2147483647, %v889
        %v898 = vand.u32 2147483647, %v890
        %v899 = vand.u32 2147483647, %v891
        %v900 = vand.u32 2147483647, %v892
        %v901 = vand.u32 2147483647, %v893
        %v902 = vand.u32 2147483647, %v894
        %v903 = vld [vmem:[%s7] sm:$0x1]
        %v904 = vld [vmem:[%s8] sm:$0x1]
        %v906 = vperm.slane %v903, 0
        %v908 = vmul.f32 %v895, %v906
        %v909 = vmul.f32 %v896, %v906
        %v910 = vmul.f32 %v897, %v906
        %v911 = vmul.f32 %v898, %v906
        %v912 = vmul.f32 %v899, %v906
        %v913 = vmul.f32 %v900, %v906
        %v914 = vmul.f32 %v901, %v906
        %v915 = vmul.f32 %v902, %v906
        %v916 = vsel %vm546, %v908, 0.0
        %917 = vadd.xlane.f32.xlu0 %v916
        %v918 = vpop.xlane.xlu0 %917
        %v919 = vsel %vm546, %v909, 0.0
        %920 = vadd.xlane.f32.xlu0 %v919
        %v921 = vpop.xlane.xlu0 %920
        %v922 = vsel %vm546, %v910, 0.0
        %923 = vadd.xlane.f32.xlu0 %v922
        %v924 = vpop.xlane.xlu0 %923
        %v925 = vsel %vm546, %v911, 0.0
        %926 = vadd.xlane.f32.xlu0 %v925
        %v927 = vpop.xlane.xlu0 %926
        %v928 = vsel %vm546, %v912, 0.0
        %929 = vadd.xlane.f32.xlu0 %v928
        %v930 = vpop.xlane.xlu0 %929
        %v931 = vsel %vm546, %v913, 0.0
        %932 = vadd.xlane.f32.xlu0 %v931
        %v933 = vpop.xlane.xlu0 %932
        %v934 = vsel %vm546, %v914, 0.0
        %935 = vadd.xlane.f32.xlu0 %v934
        %v936 = vpop.xlane.xlu0 %935
        %v937 = vsel %vm546, %v915, 0.0
        %938 = vadd.xlane.f32.xlu0 %v937
        %v939 = vpop.xlane.xlu0 %938
        %v941 = vperm.slane %v904, 0
        %942 = vset.pattern.permute.xlu0 0
        %943 = vperm.xlu0 %942, %v941
        %v944 = vpop.permute.xlu0 %943
        %v946 = vadd.f32 %v918, %v944
        %v947 = vadd.f32 %v921, %v944
        %v948 = vadd.f32 %v924, %v944
        %v949 = vadd.f32 %v927, %v944
        %v950 = vadd.f32 %v930, %v944
        %v951 = vadd.f32 %v933, %v944
        %v952 = vadd.f32 %v936, %v944
        %v953 = vadd.f32 %v939, %v944
        %v954 = vmax.f32 %v946, 0.0
        %v955 = vmax.f32 %v947, 0.0
        %v956 = vmax.f32 %v948, 0.0
        %v957 = vmax.f32 %v949, 0.0
        %v958 = vmax.f32 %v950, 0.0
        %v959 = vmax.f32 %v951, 0.0
        %v960 = vmax.f32 %v952, 0.0
        %v961 = vmax.f32 %v953, 0.0
        %v970 = vperm.slane %v954, %v461
        %v971 = vperm.slane %v955, %v461
        %v972 = vperm.slane %v956, %v461
        %v973 = vperm.slane %v957, %v461
        %v974 = vperm.slane %v958, %v461
        %v975 = vperm.slane %v959, %v461
        %v976 = vperm.slane %v960, %v461
        %v977 = vperm.slane %v961, %v461
        %v978 = vsel %vm737, %v971, %v970
        %v979 = vsel %vm739, %v972, %v978
        %v980 = vsel %vm741, %v973, %v979
        %v981 = vsel %vm743, %v974, %v980
        %v982 = vsel %vm745, %v975, %v981
        %v983 = vsel %vm747, %v976, %v982
        %v984 = vsel %vm749, %v977, %v983
        %vm986 = vcmask 64512
        %v987 = vsel %vm986, %v984, -inf
        %988 = vmax.xlane.f32.xlu0 %v987
        %v989 = vpop.xlane.xlu0 %988
        %v991 = vperm.slane %v989, 0
        %v992 = vperm.slane %v989, 1
        %v993 = vperm.slane %v989, 2
        %v994 = vperm.slane %v989, 3
        %v995 = vperm.slane %v989, 4
        %v996 = vperm.slane %v989, 5
        %v997 = vperm.slane %v989, 6
        %v998 = vperm.slane %v989, 7
        %v1007 = vsub.f32 %v954, %v991
        %v1008 = vsub.f32 %v955, %v992
        %v1009 = vsub.f32 %v956, %v993
        %v1010 = vsub.f32 %v957, %v994
        %v1011 = vsub.f32 %v958, %v995
        %v1012 = vsub.f32 %v959, %v996
        %v1013 = vsub.f32 %v960, %v997
        %v1014 = vsub.f32 %v961, %v998
        %v1015 = vmul.f32 %v1007, 1.442695
        %v1016 = vpow.pop %v1015
        %v1017 = vmul.f32 %v1008, 1.442695
        %v1018 = vpow.pop %v1017
        %v1019 = vmul.f32 %v1009, 1.442695
        %v1020 = vpow.pop %v1019
        %v1021 = vmul.f32 %v1010, 1.442695
        %v1022 = vpow.pop %v1021
        %v1023 = vmul.f32 %v1011, 1.442695
        %v1024 = vpow.pop %v1023
        %v1025 = vmul.f32 %v1012, 1.442695
        %v1026 = vpow.pop %v1025
        %v1027 = vmul.f32 %v1013, 1.442695
        %v1028 = vpow.pop %v1027
        %v1029 = vmul.f32 %v1014, 1.442695
        %v1030 = vpow.pop %v1029
        %1039 = vset.pattern.permute.xlu0 0
        %1040 = vperm.xlu0 %1039, %v1016
        %v1041 = vpop.permute.xlu0 %1040
        %1042 = vset.pattern.permute.xlu0 0
        %1043 = vperm.xlu0 %1042, %v1018
        %v1044 = vpop.permute.xlu0 %1043
        %1045 = vset.pattern.permute.xlu0 0
        %1046 = vperm.xlu0 %1045, %v1020
        %v1047 = vpop.permute.xlu0 %1046
        %1048 = vset.pattern.permute.xlu0 0
        %1049 = vperm.xlu0 %1048, %v1022
        %v1050 = vpop.permute.xlu0 %1049
        %1051 = vset.pattern.permute.xlu0 0
        %1052 = vperm.xlu0 %1051, %v1024
        %v1053 = vpop.permute.xlu0 %1052
        %1054 = vset.pattern.permute.xlu0 0
        %1055 = vperm.xlu0 %1054, %v1026
        %v1056 = vpop.permute.xlu0 %1055
        %1057 = vset.pattern.permute.xlu0 0
        %1058 = vperm.xlu0 %1057, %v1028
        %v1059 = vpop.permute.xlu0 %1058
        %1060 = vset.pattern.permute.xlu0 0
        %1061 = vperm.xlu0 %1060, %v1030
        %v1062 = vpop.permute.xlu0 %1061
        %v1063 = vperm.slane %v1041, %v461
        %v1064 = vperm.slane %v1044, %v461
        %v1065 = vperm.slane %v1047, %v461
        %v1066 = vperm.slane %v1050, %v461
        %v1067 = vperm.slane %v1053, %v461
        %v1068 = vperm.slane %v1056, %v461
        %v1069 = vperm.slane %v1059, %v461
        %v1070 = vperm.slane %v1062, %v461
        %v1071 = vsel %vm737, %v1064, %v1063
        %v1072 = vsel %vm739, %v1065, %v1071
        %v1073 = vsel %vm741, %v1066, %v1072
        %v1074 = vsel %vm743, %v1067, %v1073
        %v1075 = vsel %vm745, %v1068, %v1074
        %v1076 = vsel %vm747, %v1069, %v1075
        %v1077 = vsel %vm749, %v1070, %v1076
        %v1079 = vsel %vm986, %v1077, 0.0
        %1080 = vadd.xlane.f32.xlu0 %v1079
        %v1081 = vpop.xlane.xlu0 %1080
        %v1083 = vperm.slane %v1081, 0
        %v1084 = vperm.slane %v1081, 1
        %v1085 = vperm.slane %v1081, 2
        %v1086 = vperm.slane %v1081, 3
        %v1087 = vperm.slane %v1081, 4
        %v1088 = vperm.slane %v1081, 5
        %v1089 = vperm.slane %v1081, 6
        %v1090 = vperm.slane %v1081, 7
        %v1099 = vrcp.pop %v1083
        %v1100 = vmul.f32 %v1083, %v1099
        %v1101 = vsub.f32 1.0, %v1100
        %v1102 = vmul.f32 %v1099, %v1101
        %v1103 = vadd.f32 %v1099, %v1102
        %vm1104 = vweird.f32 %v1083
        %vm1105 = vweird.f32 %v1099
        %vm1106 = vmor %vm1104, %vm1105
        %v1107 = vsel %vm1106, %v1099, %v1103
        %v1108 = vand.u32 2147483647, %v1083
        %vm1109 = vcmp.eq.f32.partialorder %v1108, 8.507059e+37
        %v1110 = vand.u32 %v1083, 2147483648
        %v1111 = vor.u32 1.1754944e-38, %v1110
        %v1112 = vsel %vm1109, %v1111, %v1107
        %v1113 = vmul.f32 %v1016, %v1112
        %v1114 = vrcp.pop %v1084
        %v1115 = vmul.f32 %v1084, %v1114
        %v1116 = vsub.f32 1.0, %v1115
        %v1117 = vmul.f32 %v1114, %v1116
        %v1118 = vadd.f32 %v1114, %v1117
        %vm1119 = vweird.f32 %v1084
        %vm1120 = vweird.f32 %v1114
        %vm1121 = vmor %vm1119, %vm1120
        %v1122 = vsel %vm1121, %v1114, %v1118
        %v1123 = vand.u32 2147483647, %v1084
        %vm1124 = vcmp.eq.f32.partialorder %v1123, 8.507059e+37
        %v1125 = vand.u32 %v1084, 2147483648
        %v1126 = vor.u32 1.1754944e-38, %v1125
        %v1127 = vsel %vm1124, %v1126, %v1122
        %v1128 = vmul.f32 %v1018, %v1127
        %v1129 = vrcp.pop %v1085
        %v1130 = vmul.f32 %v1085, %v1129
        %v1131 = vsub.f32 1.0, %v1130
        %v1132 = vmul.f32 %v1129, %v1131
        %v1133 = vadd.f32 %v1129, %v1132
        %vm1134 = vweird.f32 %v1085
        %vm1135 = vweird.f32 %v1129
        %vm1136 = vmor %vm1134, %vm1135
        %v1137 = vsel %vm1136, %v1129, %v1133
        %v1138 = vand.u32 2147483647, %v1085
        %vm1139 = vcmp.eq.f32.partialorder %v1138, 8.507059e+37
        %v1140 = vand.u32 %v1085, 2147483648
        %v1141 = vor.u32 1.1754944e-38, %v1140
        %v1142 = vsel %vm1139, %v1141, %v1137
        %v1143 = vmul.f32 %v1020, %v1142
        %v1144 = vrcp.pop %v1086
        %v1145 = vmul.f32 %v1086, %v1144
        %v1146 = vsub.f32 1.0, %v1145
        %v1147 = vmul.f32 %v1144, %v1146
        %v1148 = vadd.f32 %v1144, %v1147
        %vm1149 = vweird.f32 %v1086
        %vm1150 = vweird.f32 %v1144
        %vm1151 = vmor %vm1149, %vm1150
        %v1152 = vsel %vm1151, %v1144, %v1148
        %v1153 = vand.u32 2147483647, %v1086
        %vm1154 = vcmp.eq.f32.partialorder %v1153, 8.507059e+37
        %v1155 = vand.u32 %v1086, 2147483648
        %v1156 = vor.u32 1.1754944e-38, %v1155
        %v1157 = vsel %vm1154, %v1156, %v1152
        %v1158 = vmul.f32 %v1022, %v1157
        %v1159 = vrcp.pop %v1087
        %v1160 = vmul.f32 %v1087, %v1159
        %v1161 = vsub.f32 1.0, %v1160
        %v1162 = vmul.f32 %v1159, %v1161
        %v1163 = vadd.f32 %v1159, %v1162
        %vm1164 = vweird.f32 %v1087
        %vm1165 = vweird.f32 %v1159
        %vm1166 = vmor %vm1164, %vm1165
        %v1167 = vsel %vm1166, %v1159, %v1163
        %v1168 = vand.u32 2147483647, %v1087
        %vm1169 = vcmp.eq.f32.partialorder %v1168, 8.507059e+37
        %v1170 = vand.u32 %v1087, 2147483648
        %v1171 = vor.u32 1.1754944e-38, %v1170
        %v1172 = vsel %vm1169, %v1171, %v1167
        %v1173 = vmul.f32 %v1024, %v1172
        %v1174 = vrcp.pop %v1088
        %v1175 = vmul.f32 %v1088, %v1174
        %v1176 = vsub.f32 1.0, %v1175
        %v1177 = vmul.f32 %v1174, %v1176
        %v1178 = vadd.f32 %v1174, %v1177
        %vm1179 = vweird.f32 %v1088
        %vm1180 = vweird.f32 %v1174
        %vm1181 = vmor %vm1179, %vm1180
        %v1182 = vsel %vm1181, %v1174, %v1178
        %v1183 = vand.u32 2147483647, %v1088
        %vm1184 = vcmp.eq.f32.partialorder %v1183, 8.507059e+37
        %v1185 = vand.u32 %v1088, 2147483648
        %v1186 = vor.u32 1.1754944e-38, %v1185
        %v1187 = vsel %vm1184, %v1186, %v1182
        %v1188 = vmul.f32 %v1026, %v1187
        %v1189 = vrcp.pop %v1089
        %v1190 = vmul.f32 %v1089, %v1189
        %v1191 = vsub.f32 1.0, %v1190
        %v1192 = vmul.f32 %v1189, %v1191
        %v1193 = vadd.f32 %v1189, %v1192
        %vm1194 = vweird.f32 %v1089
        %vm1195 = vweird.f32 %v1189
        %vm1196 = vmor %vm1194, %vm1195
        %v1197 = vsel %vm1196, %v1189, %v1193
        %v1198 = vand.u32 2147483647, %v1089
        %vm1199 = vcmp.eq.f32.partialorder %v1198, 8.507059e+37
        %v1200 = vand.u32 %v1089, 2147483648
        %v1201 = vor.u32 1.1754944e-38, %v1200
        %v1202 = vsel %vm1199, %v1201, %v1197
        %v1203 = vmul.f32 %v1028, %v1202
        %v1204 = vrcp.pop %v1090
        %v1205 = vmul.f32 %v1090, %v1204
        %v1206 = vsub.f32 1.0, %v1205
        %v1207 = vmul.f32 %v1204, %v1206
        %v1208 = vadd.f32 %v1204, %v1207
        %vm1209 = vweird.f32 %v1090
        %vm1210 = vweird.f32 %v1204
        %vm1211 = vmor %vm1209, %vm1210
        %v1212 = vsel %vm1211, %v1204, %v1208
        %v1213 = vand.u32 2147483647, %v1090
        %vm1214 = vcmp.eq.f32.partialorder %v1213, 8.507059e+37
        %v1215 = vand.u32 %v1090, 2147483648
        %v1216 = vor.u32 1.1754944e-38, %v1215
        %v1217 = vsel %vm1214, %v1216, %v1212
        %v1218 = vmul.f32 %v1030, %v1217
        %1227 = vset.pattern.permute.xlu0 0
        %1228 = vperm.xlu0 %1227, %v1113
        %v1229 = vpop.permute.xlu0 %1228
        %1230 = vset.pattern.permute.xlu0 0
        %1231 = vperm.xlu0 %1230, %v1128
        %v1232 = vpop.permute.xlu0 %1231
        %1233 = vset.pattern.permute.xlu0 0
        %1234 = vperm.xlu0 %1233, %v1143
        %v1235 = vpop.permute.xlu0 %1234
        %1236 = vset.pattern.permute.xlu0 0
        %1237 = vperm.xlu0 %1236, %v1158
        %v1238 = vpop.permute.xlu0 %1237
        %1239 = vset.pattern.permute.xlu0 0
        %1240 = vperm.xlu0 %1239, %v1173
        %v1241 = vpop.permute.xlu0 %1240
        %1242 = vset.pattern.permute.xlu0 0
        %1243 = vperm.xlu0 %1242, %v1188
        %v1244 = vpop.permute.xlu0 %1243
        %1245 = vset.pattern.permute.xlu0 0
        %1246 = vperm.xlu0 %1245, %v1203
        %v1247 = vpop.permute.xlu0 %1246
        %1248 = vset.pattern.permute.xlu0 0
        %1249 = vperm.xlu0 %1248, %v1218
        %v1250 = vpop.permute.xlu0 %1249
        %v1251 = vperm.slane %v1229, %v461
        %v1252 = vperm.slane %v1232, %v461
        %v1253 = vperm.slane %v1235, %v461
        %v1254 = vperm.slane %v1238, %v461
        %v1255 = vperm.slane %v1241, %v461
        %v1256 = vperm.slane %v1244, %v461
        %v1257 = vperm.slane %v1247, %v461
        %v1258 = vperm.slane %v1250, %v461
        %v1259 = vsel %vm737, %v1252, %v1251
        %v1260 = vsel %vm739, %v1253, %v1259
        %v1261 = vsel %vm741, %v1254, %v1260
        %v1262 = vsel %vm743, %v1255, %v1261
        %v1263 = vsel %vm745, %v1256, %v1262
        %v1264 = vsel %vm747, %v1257, %v1263
        %v1265 = vsel %vm749, %v1258, %v1264
        %1267 = vst.msk [vmem:[%s453] sm:$0xff] %vm986, %v1265
        %s1268 = scalar_lea.vmem %s7, 1
        %v1269 = vld [vmem:[%s1268] sm:$0x1]
        %s1270 = scalar_lea.vmem %s8, 1
        %v1271 = vld [vmem:[%s1270] sm:$0x1]
        %v1273 = vperm.slane %v1269, 0
        %v1275 = vmul.f32 %v895, %v1273
        %v1276 = vmul.f32 %v896, %v1273
        %v1277 = vmul.f32 %v897, %v1273
        %v1278 = vmul.f32 %v898, %v1273
        %v1279 = vmul.f32 %v899, %v1273
        %v1280 = vmul.f32 %v900, %v1273
        %v1281 = vmul.f32 %v901, %v1273
        %v1282 = vmul.f32 %v902, %v1273
        %v1283 = vsel %vm546, %v1275, 0.0
        %1284 = vadd.xlane.f32.xlu0 %v1283
        %v1285 = vpop.xlane.xlu0 %1284
        %v1286 = vsel %vm546, %v1276, 0.0
        %1287 = vadd.xlane.f32.xlu0 %v1286
        %v1288 = vpop.xlane.xlu0 %1287
        %v1289 = vsel %vm546, %v1277, 0.0
        %1290 = vadd.xlane.f32.xlu0 %v1289
        %v1291 = vpop.xlane.xlu0 %1290
        %v1292 = vsel %vm546, %v1278, 0.0
        %1293 = vadd.xlane.f32.xlu0 %v1292
        %v1294 = vpop.xlane.xlu0 %1293
        %v1295 = vsel %vm546, %v1279, 0.0
        %1296 = vadd.xlane.f32.xlu0 %v1295
        %v1297 = vpop.xlane.xlu0 %1296
        %v1298 = vsel %vm546, %v1280, 0.0
        %1299 = vadd.xlane.f32.xlu0 %v1298
        %v1300 = vpop.xlane.xlu0 %1299
        %v1301 = vsel %vm546, %v1281, 0.0
        %1302 = vadd.xlane.f32.xlu0 %v1301
        %v1303 = vpop.xlane.xlu0 %1302
        %v1304 = vsel %vm546, %v1282, 0.0
        %1305 = vadd.xlane.f32.xlu0 %v1304
        %v1306 = vpop.xlane.xlu0 %1305
        %v1308 = vperm.slane %v1271, 0
        %1309 = vset.pattern.permute.xlu0 0
        %1310 = vperm.xlu0 %1309, %v1308
        %v1311 = vpop.permute.xlu0 %1310
        %v1313 = vadd.f32 %v1285, %v1311
        %v1314 = vadd.f32 %v1288, %v1311
        %v1315 = vadd.f32 %v1291, %v1311
        %v1316 = vadd.f32 %v1294, %v1311
        %v1317 = vadd.f32 %v1297, %v1311
        %v1318 = vadd.f32 %v1300, %v1311
        %v1319 = vadd.f32 %v1303, %v1311
        %v1320 = vadd.f32 %v1306, %v1311
        %v1321 = vmax.f32 %v1313, 0.0
        %v1322 = vmax.f32 %v1314, 0.0
        %v1323 = vmax.f32 %v1315, 0.0
        %v1324 = vmax.f32 %v1316, 0.0
        %v1325 = vmax.f32 %v1317, 0.0
        %v1326 = vmax.f32 %v1318, 0.0
        %v1327 = vmax.f32 %v1319, 0.0
        %v1328 = vmax.f32 %v1320, 0.0
        %v1337 = vperm.slane %v1321, %v461
        %v1338 = vperm.slane %v1322, %v461
        %v1339 = vperm.slane %v1323, %v461
        %v1340 = vperm.slane %v1324, %v461
        %v1341 = vperm.slane %v1325, %v461
        %v1342 = vperm.slane %v1326, %v461
        %v1343 = vperm.slane %v1327, %v461
        %v1344 = vperm.slane %v1328, %v461
        %v1345 = vsel %vm737, %v1338, %v1337
        %v1346 = vsel %vm739, %v1339, %v1345
        %v1347 = vsel %vm741, %v1340, %v1346
        %v1348 = vsel %vm743, %v1341, %v1347
        %v1349 = vsel %vm745, %v1342, %v1348
        %v1350 = vsel %vm747, %v1343, %v1349
        %v1351 = vsel %vm749, %v1344, %v1350
        %v1353 = vsel %vm986, %v1351, -inf
        %1354 = vmax.xlane.f32.xlu0 %v1353
        %v1355 = vpop.xlane.xlu0 %1354
        %v1357 = vperm.slane %v1355, 0
        %v1358 = vperm.slane %v1355, 1
        %v1359 = vperm.slane %v1355, 2
        %v1360 = vperm.slane %v1355, 3
        %v1361 = vperm.slane %v1355, 4
        %v1362 = vperm.slane %v1355, 5
        %v1363 = vperm.slane %v1355, 6
        %v1364 = vperm.slane %v1355, 7
        %v1373 = vsub.f32 %v1321, %v1357
        %v1374 = vsub.f32 %v1322, %v1358
        %v1375 = vsub.f32 %v1323, %v1359
        %v1376 = vsub.f32 %v1324, %v1360
        %v1377 = vsub.f32 %v1325, %v1361
        %v1378 = vsub.f32 %v1326, %v1362
        %v1379 = vsub.f32 %v1327, %v1363
        %v1380 = vsub.f32 %v1328, %v1364
        %v1381 = vmul.f32 %v1373, 1.442695
        %v1382 = vpow.pop %v1381
        %v1383 = vmul.f32 %v1374, 1.442695
        %v1384 = vpow.pop %v1383
        %v1385 = vmul.f32 %v1375, 1.442695
        %v1386 = vpow.pop %v1385
        %v1387 = vmul.f32 %v1376, 1.442695
        %v1388 = vpow.pop %v1387
        %v1389 = vmul.f32 %v1377, 1.442695
        %v1390 = vpow.pop %v1389
        %v1391 = vmul.f32 %v1378, 1.442695
        %v1392 = vpow.pop %v1391
        %v1393 = vmul.f32 %v1379, 1.442695
        %v1394 = vpow.pop %v1393
        %v1395 = vmul.f32 %v1380, 1.442695
        %v1396 = vpow.pop %v1395
        %1405 = vset.pattern.permute.xlu0 0
        %1406 = vperm.xlu0 %1405, %v1382
        %v1407 = vpop.permute.xlu0 %1406
        %1408 = vset.pattern.permute.xlu0 0
        %1409 = vperm.xlu0 %1408, %v1384
        %v1410 = vpop.permute.xlu0 %1409
        %1411 = vset.pattern.permute.xlu0 0
        %1412 = vperm.xlu0 %1411, %v1386
        %v1413 = vpop.permute.xlu0 %1412
        %1414 = vset.pattern.permute.xlu0 0
        %1415 = vperm.xlu0 %1414, %v1388
        %v1416 = vpop.permute.xlu0 %1415
        %1417 = vset.pattern.permute.xlu0 0
        %1418 = vperm.xlu0 %1417, %v1390
        %v1419 = vpop.permute.xlu0 %1418
        %1420 = vset.pattern.permute.xlu0 0
        %1421 = vperm.xlu0 %1420, %v1392
        %v1422 = vpop.permute.xlu0 %1421
        %1423 = vset.pattern.permute.xlu0 0
        %1424 = vperm.xlu0 %1423, %v1394
        %v1425 = vpop.permute.xlu0 %1424
        %1426 = vset.pattern.permute.xlu0 0
        %1427 = vperm.xlu0 %1426, %v1396
        %v1428 = vpop.permute.xlu0 %1427
        %v1429 = vperm.slane %v1407, %v461
        %v1430 = vperm.slane %v1410, %v461
        %v1431 = vperm.slane %v1413, %v461
        %v1432 = vperm.slane %v1416, %v461
        %v1433 = vperm.slane %v1419, %v461
        %v1434 = vperm.slane %v1422, %v461
        %v1435 = vperm.slane %v1425, %v461
        %v1436 = vperm.slane %v1428, %v461
        %v1437 = vsel %vm737, %v1430, %v1429
        %v1438 = vsel %vm739, %v1431, %v1437
        %v1439 = vsel %vm741, %v1432, %v1438
        %v1440 = vsel %vm743, %v1433, %v1439
        %v1441 = vsel %vm745, %v1434, %v1440
        %v1442 = vsel %vm747, %v1435, %v1441
        %v1443 = vsel %vm749, %v1436, %v1442
        %v1445 = vsel %vm986, %v1443, 0.0
        %1446 = vadd.xlane.f32.xlu0 %v1445
        %v1447 = vpop.xlane.xlu0 %1446
        %v1449 = vperm.slane %v1447, 0
        %v1450 = vperm.slane %v1447, 1
        %v1451 = vperm.slane %v1447, 2
        %v1452 = vperm.slane %v1447, 3
        %v1453 = vperm.slane %v1447, 4
        %v1454 = vperm.slane %v1447, 5
        %v1455 = vperm.slane %v1447, 6
        %v1456 = vperm.slane %v1447, 7
        %v1465 = vrcp.pop %v1449
        %v1466 = vmul.f32 %v1449, %v1465
        %v1467 = vsub.f32 1.0, %v1466
        %v1468 = vmul.f32 %v1465, %v1467
        %v1469 = vadd.f32 %v1465, %v1468
        %vm1470 = vweird.f32 %v1449
        %vm1471 = vweird.f32 %v1465
        %vm1472 = vmor %vm1470, %vm1471
        %v1473 = vsel %vm1472, %v1465, %v1469
        %v1474 = vand.u32 2147483647, %v1449
        %vm1475 = vcmp.eq.f32.partialorder %v1474, 8.507059e+37
        %v1476 = vand.u32 %v1449, 2147483648
        %v1477 = vor.u32 1.1754944e-38, %v1476
        %v1478 = vsel %vm1475, %v1477, %v1473
        %v1479 = vmul.f32 %v1382, %v1478
        %v1480 = vrcp.pop %v1450
        %v1481 = vmul.f32 %v1450, %v1480
        %v1482 = vsub.f32 1.0, %v1481
        %v1483 = vmul.f32 %v1480, %v1482
        %v1484 = vadd.f32 %v1480, %v1483
        %vm1485 = vweird.f32 %v1450
        %vm1486 = vweird.f32 %v1480
        %vm1487 = vmor %vm1485, %vm1486
        %v1488 = vsel %vm1487, %v1480, %v1484
        %v1489 = vand.u32 2147483647, %v1450
        %vm1490 = vcmp.eq.f32.partialorder %v1489, 8.507059e+37
        %v1491 = vand.u32 %v1450, 2147483648
        %v1492 = vor.u32 1.1754944e-38, %v1491
        %v1493 = vsel %vm1490, %v1492, %v1488
        %v1494 = vmul.f32 %v1384, %v1493
        %v1495 = vrcp.pop %v1451
        %v1496 = vmul.f32 %v1451, %v1495
        %v1497 = vsub.f32 1.0, %v1496
        %v1498 = vmul.f32 %v1495, %v1497
        %v1499 = vadd.f32 %v1495, %v1498
        %vm1500 = vweird.f32 %v1451
        %vm1501 = vweird.f32 %v1495
        %vm1502 = vmor %vm1500, %vm1501
        %v1503 = vsel %vm1502, %v1495, %v1499
        %v1504 = vand.u32 2147483647, %v1451
        %vm1505 = vcmp.eq.f32.partialorder %v1504, 8.507059e+37
        %v1506 = vand.u32 %v1451, 2147483648
        %v1507 = vor.u32 1.1754944e-38, %v1506
        %v1508 = vsel %vm1505, %v1507, %v1503
        %v1509 = vmul.f32 %v1386, %v1508
        %v1510 = vrcp.pop %v1452
        %v1511 = vmul.f32 %v1452, %v1510
        %v1512 = vsub.f32 1.0, %v1511
        %v1513 = vmul.f32 %v1510, %v1512
        %v1514 = vadd.f32 %v1510, %v1513
        %vm1515 = vweird.f32 %v1452
        %vm1516 = vweird.f32 %v1510
        %vm1517 = vmor %vm1515, %vm1516
        %v1518 = vsel %vm1517, %v1510, %v1514
        %v1519 = vand.u32 2147483647, %v1452
        %vm1520 = vcmp.eq.f32.partialorder %v1519, 8.507059e+37
        %v1521 = vand.u32 %v1452, 2147483648
        %v1522 = vor.u32 1.1754944e-38, %v1521
        %v1523 = vsel %vm1520, %v1522, %v1518
        %v1524 = vmul.f32 %v1388, %v1523
        %v1525 = vrcp.pop %v1453
        %v1526 = vmul.f32 %v1453, %v1525
        %v1527 = vsub.f32 1.0, %v1526
        %v1528 = vmul.f32 %v1525, %v1527
        %v1529 = vadd.f32 %v1525, %v1528
        %vm1530 = vweird.f32 %v1453
        %vm1531 = vweird.f32 %v1525
        %vm1532 = vmor %vm1530, %vm1531
        %v1533 = vsel %vm1532, %v1525, %v1529
        %v1534 = vand.u32 2147483647, %v1453
        %vm1535 = vcmp.eq.f32.partialorder %v1534, 8.507059e+37
        %v1536 = vand.u32 %v1453, 2147483648
        %v1537 = vor.u32 1.1754944e-38, %v1536
        %v1538 = vsel %vm1535, %v1537, %v1533
        %v1539 = vmul.f32 %v1390, %v1538
        %v1540 = vrcp.pop %v1454
        %v1541 = vmul.f32 %v1454, %v1540
        %v1542 = vsub.f32 1.0, %v1541
        %v1543 = vmul.f32 %v1540, %v1542
        %v1544 = vadd.f32 %v1540, %v1543
        %vm1545 = vweird.f32 %v1454
        %vm1546 = vweird.f32 %v1540
        %vm1547 = vmor %vm1545, %vm1546
        %v1548 = vsel %vm1547, %v1540, %v1544
        %v1549 = vand.u32 2147483647, %v1454
        %vm1550 = vcmp.eq.f32.partialorder %v1549, 8.507059e+37
        %v1551 = vand.u32 %v1454, 2147483648
        %v1552 = vor.u32 1.1754944e-38, %v1551
        %v1553 = vsel %vm1550, %v1552, %v1548
        %v1554 = vmul.f32 %v1392, %v1553
        %v1555 = vrcp.pop %v1455
        %v1556 = vmul.f32 %v1455, %v1555
        %v1557 = vsub.f32 1.0, %v1556
        %v1558 = vmul.f32 %v1555, %v1557
        %v1559 = vadd.f32 %v1555, %v1558
        %vm1560 = vweird.f32 %v1455
        %vm1561 = vweird.f32 %v1555
        %vm1562 = vmor %vm1560, %vm1561
        %v1563 = vsel %vm1562, %v1555, %v1559
        %v1564 = vand.u32 2147483647, %v1455
        %vm1565 = vcmp.eq.f32.partialorder %v1564, 8.507059e+37
        %v1566 = vand.u32 %v1455, 2147483648
        %v1567 = vor.u32 1.1754944e-38, %v1566
        %v1568 = vsel %vm1565, %v1567, %v1563
        %v1569 = vmul.f32 %v1394, %v1568
        %v1570 = vrcp.pop %v1456
        %v1571 = vmul.f32 %v1456, %v1570
        %v1572 = vsub.f32 1.0, %v1571
        %v1573 = vmul.f32 %v1570, %v1572
        %v1574 = vadd.f32 %v1570, %v1573
        %vm1575 = vweird.f32 %v1456
        %vm1576 = vweird.f32 %v1570
        %vm1577 = vmor %vm1575, %vm1576
        %v1578 = vsel %vm1577, %v1570, %v1574
        %v1579 = vand.u32 2147483647, %v1456
        %vm1580 = vcmp.eq.f32.partialorder %v1579, 8.507059e+37
        %v1581 = vand.u32 %v1456, 2147483648
        %v1582 = vor.u32 1.1754944e-38, %v1581
        %v1583 = vsel %vm1580, %v1582, %v1578
        %v1584 = vmul.f32 %v1396, %v1583
        %1593 = vset.pattern.permute.xlu0 0
        %1594 = vperm.xlu0 %1593, %v1479
        %v1595 = vpop.permute.xlu0 %1594
        %1596 = vset.pattern.permute.xlu0 0
        %1597 = vperm.xlu0 %1596, %v1494
        %v1598 = vpop.permute.xlu0 %1597
        %1599 = vset.pattern.permute.xlu0 0
        %1600 = vperm.xlu0 %1599, %v1509
        %v1601 = vpop.permute.xlu0 %1600
        %1602 = vset.pattern.permute.xlu0 0
        %1603 = vperm.xlu0 %1602, %v1524
        %v1604 = vpop.permute.xlu0 %1603
        %1605 = vset.pattern.permute.xlu0 0
        %1606 = vperm.xlu0 %1605, %v1539
        %v1607 = vpop.permute.xlu0 %1606
        %1608 = vset.pattern.permute.xlu0 0
        %1609 = vperm.xlu0 %1608, %v1554
        %v1610 = vpop.permute.xlu0 %1609
        %1611 = vset.pattern.permute.xlu0 0
        %1612 = vperm.xlu0 %1611, %v1569
        %v1613 = vpop.permute.xlu0 %1612
        %1614 = vset.pattern.permute.xlu0 0
        %1615 = vperm.xlu0 %1614, %v1584
        %v1616 = vpop.permute.xlu0 %1615
        %v1617 = vperm.slane %v1595, %v461
        %v1618 = vperm.slane %v1598, %v461
        %v1619 = vperm.slane %v1601, %v461
        %v1620 = vperm.slane %v1604, %v461
        %v1621 = vperm.slane %v1607, %v461
        %v1622 = vperm.slane %v1610, %v461
        %v1623 = vperm.slane %v1613, %v461
        %v1624 = vperm.slane %v1616, %v461
        %v1625 = vsel %vm737, %v1618, %v1617
        %v1626 = vsel %vm739, %v1619, %v1625
        %v1627 = vsel %vm741, %v1620, %v1626
        %v1628 = vsel %vm743, %v1621, %v1627
        %v1629 = vsel %vm745, %v1622, %v1628
        %v1630 = vsel %vm747, %v1623, %v1629
        %v1631 = vsel %vm749, %v1624, %v1630
        %s1633 = scalar_lea.vmem %s453, 8 [#allocation12]
        %1634 = vst.msk [vmem:[%s1633] sm:$0xff] %vm986, %v1631
        %s1635 = scalar_lea.vmem %s7, 2
        %v1636 = vld [vmem:[%s1635] sm:$0x1]
        %s1637 = scalar_lea.vmem %s8, 2
        %v1638 = vld [vmem:[%s1637] sm:$0x1]
        %v1640 = vperm.slane %v1636, 0
        %v1642 = vmul.f32 %v895, %v1640
        %v1643 = vmul.f32 %v896, %v1640
        %v1644 = vmul.f32 %v897, %v1640
        %v1645 = vmul.f32 %v898, %v1640
        %v1646 = vmul.f32 %v899, %v1640
        %v1647 = vmul.f32 %v900, %v1640
        %v1648 = vmul.f32 %v901, %v1640
        %v1649 = vmul.f32 %v902, %v1640
        %v1650 = vsel %vm546, %v1642, 0.0
        %1651 = vadd.xlane.f32.xlu0 %v1650
        %v1652 = vpop.xlane.xlu0 %1651
        %v1653 = vsel %vm546, %v1643, 0.0
        %1654 = vadd.xlane.f32.xlu0 %v1653
        %v1655 = vpop.xlane.xlu0 %1654
        %v1656 = vsel %vm546, %v1644, 0.0
        %1657 = vadd.xlane.f32.xlu0 %v1656
        %v1658 = vpop.xlane.xlu0 %1657
        %v1659 = vsel %vm546, %v1645, 0.0
        %1660 = vadd.xlane.f32.xlu0 %v1659
        %v1661 = vpop.xlane.xlu0 %1660
        %v1662 = vsel %vm546, %v1646, 0.0
        %1663 = vadd.xlane.f32.xlu0 %v1662
        %v1664 = vpop.xlane.xlu0 %1663
        %v1665 = vsel %vm546, %v1647, 0.0
        %1666 = vadd.xlane.f32.xlu0 %v1665
        %v1667 = vpop.xlane.xlu0 %1666
        %v1668 = vsel %vm546, %v1648, 0.0
        %1669 = vadd.xlane.f32.xlu0 %v1668
        %v1670 = vpop.xlane.xlu0 %1669
        %v1671 = vsel %vm546, %v1649, 0.0
        %1672 = vadd.xlane.f32.xlu0 %v1671
        %v1673 = vpop.xlane.xlu0 %1672
        %v1675 = vperm.slane %v1638, 0
        %1676 = vset.pattern.permute.xlu0 0
        %1677 = vperm.xlu0 %1676, %v1675
        %v1678 = vpop.permute.xlu0 %1677
        %v1680 = vadd.f32 %v1652, %v1678
        %v1681 = vadd.f32 %v1655, %v1678
        %v1682 = vadd.f32 %v1658, %v1678
        %v1683 = vadd.f32 %v1661, %v1678
        %v1684 = vadd.f32 %v1664, %v1678
        %v1685 = vadd.f32 %v1667, %v1678
        %v1686 = vadd.f32 %v1670, %v1678
        %v1687 = vadd.f32 %v1673, %v1678
        %v1688 = vmax.f32 %v1680, 0.0
        %v1689 = vmax.f32 %v1681, 0.0
        %v1690 = vmax.f32 %v1682, 0.0
        %v1691 = vmax.f32 %v1683, 0.0
        %v1692 = vmax.f32 %v1684, 0.0
        %v1693 = vmax.f32 %v1685, 0.0
        %v1694 = vmax.f32 %v1686, 0.0
        %v1695 = vmax.f32 %v1687, 0.0
        %v1704 = vperm.slane %v1688, %v461
        %v1705 = vperm.slane %v1689, %v461
        %v1706 = vperm.slane %v1690, %v461
        %v1707 = vperm.slane %v1691, %v461
        %v1708 = vperm.slane %v1692, %v461
        %v1709 = vperm.slane %v1693, %v461
        %v1710 = vperm.slane %v1694, %v461
        %v1711 = vperm.slane %v1695, %v461
        %v1712 = vsel %vm737, %v1705, %v1704
        %v1713 = vsel %vm739, %v1706, %v1712
        %v1714 = vsel %vm741, %v1707, %v1713
        %v1715 = vsel %vm743, %v1708, %v1714
        %v1716 = vsel %vm745, %v1709, %v1715
        %v1717 = vsel %vm747, %v1710, %v1716
        %v1718 = vsel %vm749, %v1711, %v1717
        %v1720 = vsel %vm986, %v1718, -inf
        %1721 = vmax.xlane.f32.xlu0 %v1720
        %v1722 = vpop.xlane.xlu0 %1721
        %v1724 = vperm.slane %v1722, 0
        %v1725 = vperm.slane %v1722, 1
        %v1726 = vperm.slane %v1722, 2
        %v1727 = vperm.slane %v1722, 3
        %v1728 = vperm.slane %v1722, 4
        %v1729 = vperm.slane %v1722, 5
        %v1730 = vperm.slane %v1722, 6
        %v1731 = vperm.slane %v1722, 7
        %v1740 = vsub.f32 %v1688, %v1724
        %v1741 = vsub.f32 %v1689, %v1725
        %v1742 = vsub.f32 %v1690, %v1726
        %v1743 = vsub.f32 %v1691, %v1727
        %v1744 = vsub.f32 %v1692, %v1728
        %v1745 = vsub.f32 %v1693, %v1729
        %v1746 = vsub.f32 %v1694, %v1730
        %v1747 = vsub.f32 %v1695, %v1731
        %v1748 = vmul.f32 %v1740, 1.442695
        %v1749 = vpow.pop %v1748
        %v1750 = vmul.f32 %v1741, 1.442695
        %v1751 = vpow.pop %v1750
        %v1752 = vmul.f32 %v1742, 1.442695
        %v1753 = vpow.pop %v1752
        %v1754 = vmul.f32 %v1743, 1.442695
        %v1755 = vpow.pop %v1754
        %v1756 = vmul.f32 %v1744, 1.442695
        %v1757 = vpow.pop %v1756
        %v1758 = vmul.f32 %v1745, 1.442695
        %v1759 = vpow.pop %v1758
        %v1760 = vmul.f32 %v1746, 1.442695
        %v1761 = vpow.pop %v1760
        %v1762 = vmul.f32 %v1747, 1.442695
        %v1763 = vpow.pop %v1762
        %1772 = vset.pattern.permute.xlu0 0
        %1773 = vperm.xlu0 %1772, %v1749
        %v1774 = vpop.permute.xlu0 %1773
        %1775 = vset.pattern.permute.xlu0 0
        %1776 = vperm.xlu0 %1775, %v1751
        %v1777 = vpop.permute.xlu0 %1776
        %1778 = vset.pattern.permute.xlu0 0
        %1779 = vperm.xlu0 %1778, %v1753
        %v1780 = vpop.permute.xlu0 %1779
        %1781 = vset.pattern.permute.xlu0 0
        %1782 = vperm.xlu0 %1781, %v1755
        %v1783 = vpop.permute.xlu0 %1782
        %1784 = vset.pattern.permute.xlu0 0
        %1785 = vperm.xlu0 %1784, %v1757
        %v1786 = vpop.permute.xlu0 %1785
        %1787 = vset.pattern.permute.xlu0 0
        %1788 = vperm.xlu0 %1787, %v1759
        %v1789 = vpop.permute.xlu0 %1788
        %1790 = vset.pattern.permute.xlu0 0
        %1791 = vperm.xlu0 %1790, %v1761
        %v1792 = vpop.permute.xlu0 %1791
        %1793 = vset.pattern.permute.xlu0 0
        %1794 = vperm.xlu0 %1793, %v1763
        %v1795 = vpop.permute.xlu0 %1794
        %v1796 = vperm.slane %v1774, %v461
        %v1797 = vperm.slane %v1777, %v461
        %v1798 = vperm.slane %v1780, %v461
        %v1799 = vperm.slane %v1783, %v461
        %v1800 = vperm.slane %v1786, %v461
        %v1801 = vperm.slane %v1789, %v461
        %v1802 = vperm.slane %v1792, %v461
        %v1803 = vperm.slane %v1795, %v461
        %v1804 = vsel %vm737, %v1797, %v1796
        %v1805 = vsel %vm739, %v1798, %v1804
        %v1806 = vsel %vm741, %v1799, %v1805
        %v1807 = vsel %vm743, %v1800, %v1806
        %v1808 = vsel %vm745, %v1801, %v1807
        %v1809 = vsel %vm747, %v1802, %v1808
        %v1810 = vsel %vm749, %v1803, %v1809
        %v1812 = vsel %vm986, %v1810, 0.0
        %1813 = vadd.xlane.f32.xlu0 %v1812
        %v1814 = vpop.xlane.xlu0 %1813
        %v1816 = vperm.slane %v1814, 0
        %v1817 = vperm.slane %v1814, 1
        %v1818 = vperm.slane %v1814, 2
        %v1819 = vperm.slane %v1814, 3
        %v1820 = vperm.slane %v1814, 4
        %v1821 = vperm.slane %v1814, 5
        %v1822 = vperm.slane %v1814, 6
        %v1823 = vperm.slane %v1814, 7
        %v1832 = vrcp.pop %v1816
        %v1833 = vmul.f32 %v1816, %v1832
        %v1834 = vsub.f32 1.0, %v1833
        %v1835 = vmul.f32 %v1832, %v1834
        %v1836 = vadd.f32 %v1832, %v1835
        %vm1837 = vweird.f32 %v1816
        %vm1838 = vweird.f32 %v1832
        %vm1839 = vmor %vm1837, %vm1838
        %v1840 = vsel %vm1839, %v1832, %v1836
        %v1841 = vand.u32 2147483647, %v1816
        %vm1842 = vcmp.eq.f32.partialorder %v1841, 8.507059e+37
        %v1843 = vand.u32 %v1816, 2147483648
        %v1844 = vor.u32 1.1754944e-38, %v1843
        %v1845 = vsel %vm1842, %v1844, %v1840
        %v1846 = vmul.f32 %v1749, %v1845
        %v1847 = vrcp.pop %v1817
        %v1848 = vmul.f32 %v1817, %v1847
        %v1849 = vsub.f32 1.0, %v1848
        %v1850 = vmul.f32 %v1847, %v1849
        %v1851 = vadd.f32 %v1847, %v1850
        %vm1852 = vweird.f32 %v1817
        %vm1853 = vweird.f32 %v1847
        %vm1854 = vmor %vm1852, %vm1853
        %v1855 = vsel %vm1854, %v1847, %v1851
        %v1856 = vand.u32 2147483647, %v1817
        %vm1857 = vcmp.eq.f32.partialorder %v1856, 8.507059e+37
        %v1858 = vand.u32 %v1817, 2147483648
        %v1859 = vor.u32 1.1754944e-38, %v1858
        %v1860 = vsel %vm1857, %v1859, %v1855
        %v1861 = vmul.f32 %v1751, %v1860
        %v1862 = vrcp.pop %v1818
        %v1863 = vmul.f32 %v1818, %v1862
        %v1864 = vsub.f32 1.0, %v1863
        %v1865 = vmul.f32 %v1862, %v1864
        %v1866 = vadd.f32 %v1862, %v1865
        %vm1867 = vweird.f32 %v1818
        %vm1868 = vweird.f32 %v1862
        %vm1869 = vmor %vm1867, %vm1868
        %v1870 = vsel %vm1869, %v1862, %v1866
        %v1871 = vand.u32 2147483647, %v1818
        %vm1872 = vcmp.eq.f32.partialorder %v1871, 8.507059e+37
        %v1873 = vand.u32 %v1818, 2147483648
        %v1874 = vor.u32 1.1754944e-38, %v1873
        %v1875 = vsel %vm1872, %v1874, %v1870
        %v1876 = vmul.f32 %v1753, %v1875
        %v1877 = vrcp.pop %v1819
        %v1878 = vmul.f32 %v1819, %v1877
        %v1879 = vsub.f32 1.0, %v1878
        %v1880 = vmul.f32 %v1877, %v1879
        %v1881 = vadd.f32 %v1877, %v1880
        %vm1882 = vweird.f32 %v1819
        %vm1883 = vweird.f32 %v1877
        %vm1884 = vmor %vm1882, %vm1883
        %v1885 = vsel %vm1884, %v1877, %v1881
        %v1886 = vand.u32 2147483647, %v1819
        %vm1887 = vcmp.eq.f32.partialorder %v1886, 8.507059e+37
        %v1888 = vand.u32 %v1819, 2147483648
        %v1889 = vor.u32 1.1754944e-38, %v1888
        %v1890 = vsel %vm1887, %v1889, %v1885
        %v1891 = vmul.f32 %v1755, %v1890
        %v1892 = vrcp.pop %v1820
        %v1893 = vmul.f32 %v1820, %v1892
        %v1894 = vsub.f32 1.0, %v1893
        %v1895 = vmul.f32 %v1892, %v1894
        %v1896 = vadd.f32 %v1892, %v1895
        %vm1897 = vweird.f32 %v1820
        %vm1898 = vweird.f32 %v1892
        %vm1899 = vmor %vm1897, %vm1898
        %v1900 = vsel %vm1899, %v1892, %v1896
        %v1901 = vand.u32 2147483647, %v1820
        %vm1902 = vcmp.eq.f32.partialorder %v1901, 8.507059e+37
        %v1903 = vand.u32 %v1820, 2147483648
        %v1904 = vor.u32 1.1754944e-38, %v1903
        %v1905 = vsel %vm1902, %v1904, %v1900
        %v1906 = vmul.f32 %v1757, %v1905
        %v1907 = vrcp.pop %v1821
        %v1908 = vmul.f32 %v1821, %v1907
        %v1909 = vsub.f32 1.0, %v1908
        %v1910 = vmul.f32 %v1907, %v1909
        %v1911 = vadd.f32 %v1907, %v1910
        %vm1912 = vweird.f32 %v1821
        %vm1913 = vweird.f32 %v1907
        %vm1914 = vmor %vm1912, %vm1913
        %v1915 = vsel %vm1914, %v1907, %v1911
        %v1916 = vand.u32 2147483647, %v1821
        %vm1917 = vcmp.eq.f32.partialorder %v1916, 8.507059e+37
        %v1918 = vand.u32 %v1821, 2147483648
        %v1919 = vor.u32 1.1754944e-38, %v1918
        %v1920 = vsel %vm1917, %v1919, %v1915
        %v1921 = vmul.f32 %v1759, %v1920
        %v1922 = vrcp.pop %v1822
        %v1923 = vmul.f32 %v1822, %v1922
        %v1924 = vsub.f32 1.0, %v1923
        %v1925 = vmul.f32 %v1922, %v1924
        %v1926 = vadd.f32 %v1922, %v1925
        %vm1927 = vweird.f32 %v1822
        %vm1928 = vweird.f32 %v1922
        %vm1929 = vmor %vm1927, %vm1928
        %v1930 = vsel %vm1929, %v1922, %v1926
        %v1931 = vand.u32 2147483647, %v1822
        %vm1932 = vcmp.eq.f32.partialorder %v1931, 8.507059e+37
        %v1933 = vand.u32 %v1822, 2147483648
        %v1934 = vor.u32 1.1754944e-38, %v1933
        %v1935 = vsel %vm1932, %v1934, %v1930
        %v1936 = vmul.f32 %v1761, %v1935
        %v1937 = vrcp.pop %v1823
        %v1938 = vmul.f32 %v1823, %v1937
        %v1939 = vsub.f32 1.0, %v1938
        %v1940 = vmul.f32 %v1937, %v1939
        %v1941 = vadd.f32 %v1937, %v1940
        %vm1942 = vweird.f32 %v1823
        %vm1943 = vweird.f32 %v1937
        %vm1944 = vmor %vm1942, %vm1943
        %v1945 = vsel %vm1944, %v1937, %v1941
        %v1946 = vand.u32 2147483647, %v1823
        %vm1947 = vcmp.eq.f32.partialorder %v1946, 8.507059e+37
        %v1948 = vand.u32 %v1823, 2147483648
        %v1949 = vor.u32 1.1754944e-38, %v1948
        %v1950 = vsel %vm1947, %v1949, %v1945
        %v1951 = vmul.f32 %v1763, %v1950
        %1960 = vset.pattern.permute.xlu0 0
        %1961 = vperm.xlu0 %1960, %v1846
        %v1962 = vpop.permute.xlu0 %1961
        %1963 = vset.pattern.permute.xlu0 0
        %1964 = vperm.xlu0 %1963, %v1861
        %v1965 = vpop.permute.xlu0 %1964
        %1966 = vset.pattern.permute.xlu0 0
        %1967 = vperm.xlu0 %1966, %v1876
        %v1968 = vpop.permute.xlu0 %1967
        %1969 = vset.pattern.permute.xlu0 0
        %1970 = vperm.xlu0 %1969, %v1891
        %v1971 = vpop.permute.xlu0 %1970
        %1972 = vset.pattern.permute.xlu0 0
        %1973 = vperm.xlu0 %1972, %v1906
        %v1974 = vpop.permute.xlu0 %1973
        %1975 = vset.pattern.permute.xlu0 0
        %1976 = vperm.xlu0 %1975, %v1921
        %v1977 = vpop.permute.xlu0 %1976
        %1978 = vset.pattern.permute.xlu0 0
        %1979 = vperm.xlu0 %1978, %v1936
        %v1980 = vpop.permute.xlu0 %1979
        %1981 = vset.pattern.permute.xlu0 0
        %1982 = vperm.xlu0 %1981, %v1951
        %v1983 = vpop.permute.xlu0 %1982
        %v1984 = vperm.slane %v1962, %v461
        %v1985 = vperm.slane %v1965, %v461
        %v1986 = vperm.slane %v1968, %v461
        %v1987 = vperm.slane %v1971, %v461
        %v1988 = vperm.slane %v1974, %v461
        %v1989 = vperm.slane %v1977, %v461
        %v1990 = vperm.slane %v1980, %v461
        %v1991 = vperm.slane %v1983, %v461
        %v1992 = vsel %vm737, %v1985, %v1984
        %v1993 = vsel %vm739, %v1986, %v1992
        %v1994 = vsel %vm741, %v1987, %v1993
        %v1995 = vsel %vm743, %v1988, %v1994
        %v1996 = vsel %vm745, %v1989, %v1995
        %v1997 = vsel %vm747, %v1990, %v1996
        %v1998 = vsel %vm749, %v1991, %v1997
        %s2000 = scalar_lea.vmem %s453, 16 [#allocation12]
        %2001 = vst.msk [vmem:[%s2000] sm:$0xff] %vm986, %v1998
        %s2002 = scalar_lea.vmem %s7, 3
        %v2003 = vld [vmem:[%s2002] sm:$0x1]
        %s2004 = scalar_lea.vmem %s8, 3
        %v2005 = vld [vmem:[%s2004] sm:$0x1]
        %v2007 = vperm.slane %v2003, 0
        %v2009 = vmul.f32 %v895, %v2007
        %v2010 = vmul.f32 %v896, %v2007
        %v2011 = vmul.f32 %v897, %v2007
        %v2012 = vmul.f32 %v898, %v2007
        %v2013 = vmul.f32 %v899, %v2007
        %v2014 = vmul.f32 %v900, %v2007
        %v2015 = vmul.f32 %v901, %v2007
        %v2016 = vmul.f32 %v902, %v2007
        %v2017 = vsel %vm546, %v2009, 0.0
        %2018 = vadd.xlane.f32.xlu0 %v2017
        %v2019 = vpop.xlane.xlu0 %2018
        %v2020 = vsel %vm546, %v2010, 0.0
        %2021 = vadd.xlane.f32.xlu0 %v2020
        %v2022 = vpop.xlane.xlu0 %2021
        %v2023 = vsel %vm546, %v2011, 0.0
        %2024 = vadd.xlane.f32.xlu0 %v2023
        %v2025 = vpop.xlane.xlu0 %2024
        %v2026 = vsel %vm546, %v2012, 0.0
        %2027 = vadd.xlane.f32.xlu0 %v2026
        %v2028 = vpop.xlane.xlu0 %2027
        %v2029 = vsel %vm546, %v2013, 0.0
        %2030 = vadd.xlane.f32.xlu0 %v2029
        %v2031 = vpop.xlane.xlu0 %2030
        %v2032 = vsel %vm546, %v2014, 0.0
        %2033 = vadd.xlane.f32.xlu0 %v2032
        %v2034 = vpop.xlane.xlu0 %2033
        %v2035 = vsel %vm546, %v2015, 0.0
        %2036 = vadd.xlane.f32.xlu0 %v2035
        %v2037 = vpop.xlane.xlu0 %2036
        %v2038 = vsel %vm546, %v2016, 0.0
        %2039 = vadd.xlane.f32.xlu0 %v2038
        %v2040 = vpop.xlane.xlu0 %2039
        %v2042 = vperm.slane %v2005, 0
        %2043 = vset.pattern.permute.xlu0 0
        %2044 = vperm.xlu0 %2043, %v2042
        %v2045 = vpop.permute.xlu0 %2044
        %v2047 = vadd.f32 %v2019, %v2045
        %v2048 = vadd.f32 %v2022, %v2045
        %v2049 = vadd.f32 %v2025, %v2045
        %v2050 = vadd.f32 %v2028, %v2045
        %v2051 = vadd.f32 %v2031, %v2045
        %v2052 = vadd.f32 %v2034, %v2045
        %v2053 = vadd.f32 %v2037, %v2045
        %v2054 = vadd.f32 %v2040, %v2045
        %v2055 = vmax.f32 %v2047, 0.0
        %v2056 = vmax.f32 %v2048, 0.0
        %v2057 = vmax.f32 %v2049, 0.0
        %v2058 = vmax.f32 %v2050, 0.0
        %v2059 = vmax.f32 %v2051, 0.0
        %v2060 = vmax.f32 %v2052, 0.0
        %v2061 = vmax.f32 %v2053, 0.0
        %v2062 = vmax.f32 %v2054, 0.0
        %v2071 = vperm.slane %v2055, %v461
        %v2072 = vperm.slane %v2056, %v461
        %v2073 = vperm.slane %v2057, %v461
        %v2074 = vperm.slane %v2058, %v461
        %v2075 = vperm.slane %v2059, %v461
        %v2076 = vperm.slane %v2060, %v461
        %v2077 = vperm.slane %v2061, %v461
        %v2078 = vperm.slane %v2062, %v461
        %v2079 = vsel %vm737, %v2072, %v2071
        %v2080 = vsel %vm739, %v2073, %v2079
        %v2081 = vsel %vm741, %v2074, %v2080
        %v2082 = vsel %vm743, %v2075, %v2081
        %v2083 = vsel %vm745, %v2076, %v2082
        %v2084 = vsel %vm747, %v2077, %v2083
        %v2085 = vsel %vm749, %v2078, %v2084
        %v2087 = vsel %vm986, %v2085, -inf
        %2088 = vmax.xlane.f32.xlu0 %v2087
        %v2089 = vpop.xlane.xlu0 %2088
        %v2091 = vperm.slane %v2089, 0
        %v2092 = vperm.slane %v2089, 1
        %v2093 = vperm.slane %v2089, 2
        %v2094 = vperm.slane %v2089, 3
        %v2095 = vperm.slane %v2089, 4
        %v2096 = vperm.slane %v2089, 5
        %v2097 = vperm.slane %v2089, 6
        %v2098 = vperm.slane %v2089, 7
        %v2107 = vsub.f32 %v2055, %v2091
        %v2108 = vsub.f32 %v2056, %v2092
        %v2109 = vsub.f32 %v2057, %v2093
        %v2110 = vsub.f32 %v2058, %v2094
        %v2111 = vsub.f32 %v2059, %v2095
        %v2112 = vsub.f32 %v2060, %v2096
        %v2113 = vsub.f32 %v2061, %v2097
        %v2114 = vsub.f32 %v2062, %v2098
        %v2115 = vmul.f32 %v2107, 1.442695
        %v2116 = vpow.pop %v2115
        %v2117 = vmul.f32 %v2108, 1.442695
        %v2118 = vpow.pop %v2117
        %v2119 = vmul.f32 %v2109, 1.442695
        %v2120 = vpow.pop %v2119
        %v2121 = vmul.f32 %v2110, 1.442695
        %v2122 = vpow.pop %v2121
        %v2123 = vmul.f32 %v2111, 1.442695
        %v2124 = vpow.pop %v2123
        %v2125 = vmul.f32 %v2112, 1.442695
        %v2126 = vpow.pop %v2125
        %v2127 = vmul.f32 %v2113, 1.442695
        %v2128 = vpow.pop %v2127
        %v2129 = vmul.f32 %v2114, 1.442695
        %v2130 = vpow.pop %v2129
        %2139 = vset.pattern.permute.xlu0 0
        %2140 = vperm.xlu0 %2139, %v2116
        %v2141 = vpop.permute.xlu0 %2140
        %2142 = vset.pattern.permute.xlu0 0
        %2143 = vperm.xlu0 %2142, %v2118
        %v2144 = vpop.permute.xlu0 %2143
        %2145 = vset.pattern.permute.xlu0 0
        %2146 = vperm.xlu0 %2145, %v2120
        %v2147 = vpop.permute.xlu0 %2146
        %2148 = vset.pattern.permute.xlu0 0
        %2149 = vperm.xlu0 %2148, %v2122
        %v2150 = vpop.permute.xlu0 %2149
        %2151 = vset.pattern.permute.xlu0 0
        %2152 = vperm.xlu0 %2151, %v2124
        %v2153 = vpop.permute.xlu0 %2152
        %2154 = vset.pattern.permute.xlu0 0
        %2155 = vperm.xlu0 %2154, %v2126
        %v2156 = vpop.permute.xlu0 %2155
        %2157 = vset.pattern.permute.xlu0 0
        %2158 = vperm.xlu0 %2157, %v2128
        %v2159 = vpop.permute.xlu0 %2158
        %2160 = vset.pattern.permute.xlu0 0
        %2161 = vperm.xlu0 %2160, %v2130
        %v2162 = vpop.permute.xlu0 %2161
        %v2163 = vperm.slane %v2141, %v461
        %v2164 = vperm.slane %v2144, %v461
        %v2165 = vperm.slane %v2147, %v461
        %v2166 = vperm.slane %v2150, %v461
        %v2167 = vperm.slane %v2153, %v461
        %v2168 = vperm.slane %v2156, %v461
        %v2169 = vperm.slane %v2159, %v461
        %v2170 = vperm.slane %v2162, %v461
        %v2171 = vsel %vm737, %v2164, %v2163
        %v2172 = vsel %vm739, %v2165, %v2171
        %v2173 = vsel %vm741, %v2166, %v2172
        %v2174 = vsel %vm743, %v2167, %v2173
        %v2175 = vsel %vm745, %v2168, %v2174
        %v2176 = vsel %vm747, %v2169, %v2175
        %v2177 = vsel %vm749, %v2170, %v2176
        %v2179 = vsel %vm986, %v2177, 0.0
        %2180 = vadd.xlane.f32.xlu0 %v2179
        %v2181 = vpop.xlane.xlu0 %2180
        %v2183 = vperm.slane %v2181, 0
        %v2184 = vperm.slane %v2181, 1
        %v2185 = vperm.slane %v2181, 2
        %v2186 = vperm.slane %v2181, 3
        %v2187 = vperm.slane %v2181, 4
        %v2188 = vperm.slane %v2181, 5
        %v2189 = vperm.slane %v2181, 6
        %v2190 = vperm.slane %v2181, 7
        %v2199 = vrcp.pop %v2183
        %v2200 = vmul.f32 %v2183, %v2199
        %v2201 = vsub.f32 1.0, %v2200
        %v2202 = vmul.f32 %v2199, %v2201
        %v2203 = vadd.f32 %v2199, %v2202
        %vm2204 = vweird.f32 %v2183
        %vm2205 = vweird.f32 %v2199
        %vm2206 = vmor %vm2204, %vm2205
        %v2207 = vsel %vm2206, %v2199, %v2203
        %v2208 = vand.u32 2147483647, %v2183
        %vm2209 = vcmp.eq.f32.partialorder %v2208, 8.507059e+37
        %v2210 = vand.u32 %v2183, 2147483648
        %v2211 = vor.u32 1.1754944e-38, %v2210
        %v2212 = vsel %vm2209, %v2211, %v2207
        %v2213 = vmul.f32 %v2116, %v2212
        %v2214 = vrcp.pop %v2184
        %v2215 = vmul.f32 %v2184, %v2214
        %v2216 = vsub.f32 1.0, %v2215
        %v2217 = vmul.f32 %v2214, %v2216
        %v2218 = vadd.f32 %v2214, %v2217
        %vm2219 = vweird.f32 %v2184
        %vm2220 = vweird.f32 %v2214
        %vm2221 = vmor %vm2219, %vm2220
        %v2222 = vsel %vm2221, %v2214, %v2218
        %v2223 = vand.u32 2147483647, %v2184
        %vm2224 = vcmp.eq.f32.partialorder %v2223, 8.507059e+37
        %v2225 = vand.u32 %v2184, 2147483648
        %v2226 = vor.u32 1.1754944e-38, %v2225
        %v2227 = vsel %vm2224, %v2226, %v2222
        %v2228 = vmul.f32 %v2118, %v2227
        %v2229 = vrcp.pop %v2185
        %v2230 = vmul.f32 %v2185, %v2229
        %v2231 = vsub.f32 1.0, %v2230
        %v2232 = vmul.f32 %v2229, %v2231
        %v2233 = vadd.f32 %v2229, %v2232
        %vm2234 = vweird.f32 %v2185
        %vm2235 = vweird.f32 %v2229
        %vm2236 = vmor %vm2234, %vm2235
        %v2237 = vsel %vm2236, %v2229, %v2233
        %v2238 = vand.u32 2147483647, %v2185
        %vm2239 = vcmp.eq.f32.partialorder %v2238, 8.507059e+37
        %v2240 = vand.u32 %v2185, 2147483648
        %v2241 = vor.u32 1.1754944e-38, %v2240
        %v2242 = vsel %vm2239, %v2241, %v2237
        %v2243 = vmul.f32 %v2120, %v2242
        %v2244 = vrcp.pop %v2186
        %v2245 = vmul.f32 %v2186, %v2244
        %v2246 = vsub.f32 1.0, %v2245
        %v2247 = vmul.f32 %v2244, %v2246
        %v2248 = vadd.f32 %v2244, %v2247
        %vm2249 = vweird.f32 %v2186
        %vm2250 = vweird.f32 %v2244
        %vm2251 = vmor %vm2249, %vm2250
        %v2252 = vsel %vm2251, %v2244, %v2248
        %v2253 = vand.u32 2147483647, %v2186
        %vm2254 = vcmp.eq.f32.partialorder %v2253, 8.507059e+37
        %v2255 = vand.u32 %v2186, 2147483648
        %v2256 = vor.u32 1.1754944e-38, %v2255
        %v2257 = vsel %vm2254, %v2256, %v2252
        %v2258 = vmul.f32 %v2122, %v2257
        %v2259 = vrcp.pop %v2187
        %v2260 = vmul.f32 %v2187, %v2259
        %v2261 = vsub.f32 1.0, %v2260
        %v2262 = vmul.f32 %v2259, %v2261
        %v2263 = vadd.f32 %v2259, %v2262
        %vm2264 = vweird.f32 %v2187
        %vm2265 = vweird.f32 %v2259
        %vm2266 = vmor %vm2264, %vm2265
        %v2267 = vsel %vm2266, %v2259, %v2263
        %v2268 = vand.u32 2147483647, %v2187
        %vm2269 = vcmp.eq.f32.partialorder %v2268, 8.507059e+37
        %v2270 = vand.u32 %v2187, 2147483648
        %v2271 = vor.u32 1.1754944e-38, %v2270
        %v2272 = vsel %vm2269, %v2271, %v2267
        %v2273 = vmul.f32 %v2124, %v2272
        %v2274 = vrcp.pop %v2188
        %v2275 = vmul.f32 %v2188, %v2274
        %v2276 = vsub.f32 1.0, %v2275
        %v2277 = vmul.f32 %v2274, %v2276
        %v2278 = vadd.f32 %v2274, %v2277
        %vm2279 = vweird.f32 %v2188
        %vm2280 = vweird.f32 %v2274
        %vm2281 = vmor %vm2279, %vm2280
        %v2282 = vsel %vm2281, %v2274, %v2278
        %v2283 = vand.u32 2147483647, %v2188
        %vm2284 = vcmp.eq.f32.partialorder %v2283, 8.507059e+37
        %v2285 = vand.u32 %v2188, 2147483648
        %v2286 = vor.u32 1.1754944e-38, %v2285
        %v2287 = vsel %vm2284, %v2286, %v2282
        %v2288 = vmul.f32 %v2126, %v2287
        %v2289 = vrcp.pop %v2189
        %v2290 = vmul.f32 %v2189, %v2289
        %v2291 = vsub.f32 1.0, %v2290
        %v2292 = vmul.f32 %v2289, %v2291
        %v2293 = vadd.f32 %v2289, %v2292
        %vm2294 = vweird.f32 %v2189
        %vm2295 = vweird.f32 %v2289
        %vm2296 = vmor %vm2294, %vm2295
        %v2297 = vsel %vm2296, %v2289, %v2293
        %v2298 = vand.u32 2147483647, %v2189
        %vm2299 = vcmp.eq.f32.partialorder %v2298, 8.507059e+37
        %v2300 = vand.u32 %v2189, 2147483648
        %v2301 = vor.u32 1.1754944e-38, %v2300
        %v2302 = vsel %vm2299, %v2301, %v2297
        %v2303 = vmul.f32 %v2128, %v2302
        %v2304 = vrcp.pop %v2190
        %v2305 = vmul.f32 %v2190, %v2304
        %v2306 = vsub.f32 1.0, %v2305
        %v2307 = vmul.f32 %v2304, %v2306
        %v2308 = vadd.f32 %v2304, %v2307
        %vm2309 = vweird.f32 %v2190
        %vm2310 = vweird.f32 %v2304
        %vm2311 = vmor %vm2309, %vm2310
        %v2312 = vsel %vm2311, %v2304, %v2308
        %v2313 = vand.u32 2147483647, %v2190
        %vm2314 = vcmp.eq.f32.partialorder %v2313, 8.507059e+37
        %v2315 = vand.u32 %v2190, 2147483648
        %v2316 = vor.u32 1.1754944e-38, %v2315
        %v2317 = vsel %vm2314, %v2316, %v2312
        %v2318 = vmul.f32 %v2130, %v2317
        %2327 = vset.pattern.permute.xlu0 0
        %2328 = vperm.xlu0 %2327, %v2213
        %v2329 = vpop.permute.xlu0 %2328
        %2330 = vset.pattern.permute.xlu0 0
        %2331 = vperm.xlu0 %2330, %v2228
        %v2332 = vpop.permute.xlu0 %2331
        %2333 = vset.pattern.permute.xlu0 0
        %2334 = vperm.xlu0 %2333, %v2243
        %v2335 = vpop.permute.xlu0 %2334
        %2336 = vset.pattern.permute.xlu0 0
        %2337 = vperm.xlu0 %2336, %v2258
        %v2338 = vpop.permute.xlu0 %2337
        %2339 = vset.pattern.permute.xlu0 0
        %2340 = vperm.xlu0 %2339, %v2273
        %v2341 = vpop.permute.xlu0 %2340
        %2342 = vset.pattern.permute.xlu0 0
        %2343 = vperm.xlu0 %2342, %v2288
        %v2344 = vpop.permute.xlu0 %2343
        %2345 = vset.pattern.permute.xlu0 0
        %2346 = vperm.xlu0 %2345, %v2303
        %v2347 = vpop.permute.xlu0 %2346
        %2348 = vset.pattern.permute.xlu0 0
        %2349 = vperm.xlu0 %2348, %v2318
        %v2350 = vpop.permute.xlu0 %2349
        %v2351 = vperm.slane %v2329, %v461
        %v2352 = vperm.slane %v2332, %v461
        %v2353 = vperm.slane %v2335, %v461
        %v2354 = vperm.slane %v2338, %v461
        %v2355 = vperm.slane %v2341, %v461
        %v2356 = vperm.slane %v2344, %v461
        %v2357 = vperm.slane %v2347, %v461
        %v2358 = vperm.slane %v2350, %v461
        %v2359 = vsel %vm737, %v2352, %v2351
        %v2360 = vsel %vm739, %v2353, %v2359
        %v2361 = vsel %vm741, %v2354, %v2360
        %v2362 = vsel %vm743, %v2355, %v2361
        %v2363 = vsel %vm745, %v2356, %v2362
        %v2364 = vsel %vm747, %v2357, %v2363
        %v2365 = vsel %vm749, %v2358, %v2364
        %s2367 = scalar_lea.vmem %s453, 24 [#allocation12]
        %2368 = vst.msk [vmem:[%s2367] sm:$0xff] %vm986, %v2365
        %s2369 = sand.u32 %s235, 1
        %s2370 = scalar_lea.sflag [#allocation4], %s2369
        %s2371 = sand.u32 %s235, 1
        %s2372 = smul.addr %s2371, 8
        %s2373 = scalar_lea.vmem [#allocation11], %s2372
        %s2374 = sand.u32 %s261, 1
        %s2375 = scalar_lea.sflag [#allocation13], %s2374
        %s2376 = sand.u32 %s261, 1
        %s2377 = smul.addr %s2376, 32
        %s2378 = scalar_lea.vmem [#allocation12], %s2377
        // Predicated region
        $region77: #{tpu_custom_call.1} parent=55 // pred_check
          %p2379 = pneg %p245
        $region78: #{tpu_custom_call.1} parent=55 // pred_check_branch
          %2381 = sbr.rel (%p2379) target = $region80
        $region79: #{tpu_custom_call.1} parent=55 // pred_region
          %2383 = vsyncadd %s2370, 0
          %s2384 = smul.addr %s33, 8
          %s2385 = scalar_lea.hbm %s9, %s2384
          %s2387 = sshll.u32 %s2373, 4
          %s2388 = int_to_ptr.vmem [resolvable:$true] %s2387
          %s2389 = sshll.u32 %s2385, 4
          %s2390 = int_to_ptr.hbm [resolvable:$true] %s2389
          %2392 = dma.vmem_to_hbm [thread:$0]  %s2388, 128, %s2390, %s2370
        $region80: #{tpu_custom_call.1} parent=55 // pred_fallthru
          _
        // Predicated region
        $region81: #{tpu_custom_call.1} parent=55 // pred_check
          %p2393 = pneg %p271
        $region82: #{tpu_custom_call.1} parent=55 // pred_check_branch
          %2395 = sbr.rel (%p2393) target = $region84
        $region83: #{tpu_custom_call.1} parent=55 // pred_region
          %2397 = vsyncadd %s2375, 0
          %s2398 = smul.addr %s33, 4
          %s2399 = smul.addr %s2398, 8
          %s2400 = scalar_lea.hbm %s10, %s2399
          %s2401 = sshll.u32 %s2378, 4
          %s2402 = int_to_ptr.vmem [resolvable:$true] %s2401
          %s2403 = sshll.u32 %s2400, 4
          %s2404 = int_to_ptr.hbm [resolvable:$true] %s2403
          %2409 = dma.vmem_to_hbm [thread:$0]  %s2402, 512, %s2404, %s2375, 128, 128, 8
        $region84: #{tpu_custom_call.1} parent=55 // pred_fallthru
          _
      $region56: #{tpu_custom_call.1} parent=5 // pred_fallthru
        _
      %p2410 = scmp.le.s32.totalorder 2, %s28
      // Predicated region
      $region85: #{tpu_custom_call.1} parent=5 // pred_check
        %p2411 = pneg %p2410
      $region86: #{tpu_custom_call.1} parent=5 // pred_check_branch
        %2413 = sbr.rel (%p2411) target = $region88
      $region87: #{tpu_custom_call.1} parent=5 // pred_region
        %s2414 = ssub.s32 %s28, 2
        // Predicated region
        $region89: #{tpu_custom_call.1} parent=87 // pred_check
          %p2415 = pneg %p251
        $region90: #{tpu_custom_call.1} parent=87 // pred_check_branch
          %2417 = sbr.rel (%p2415) target = $region92
        $region91: #{tpu_custom_call.1} parent=87 // pred_region
          %s2418 = sand.u32 %s236, 1
          %s2419 = scalar_lea.sflag [#allocation4], %s2418
          %s2420 = sand.u32 %s236, 1
          %s2421 = smul.addr %s2420, 8
          %s2422 = scalar_lea.vmem [#allocation11], %s2421
          %2424 = dma.done %s2419, 128
        $region92: #{tpu_custom_call.1} parent=87 // pred_fallthru
          _
        // Predicated region
        $region93: #{tpu_custom_call.1} parent=87 // pred_check
          %p2425 = pneg %p277
        $region94: #{tpu_custom_call.1} parent=87 // pred_check_branch
          %2427 = sbr.rel (%p2425) target = $region96
        $region95: #{tpu_custom_call.1} parent=87 // pred_region
          %s2428 = sand.u32 %s262, 1
          %s2429 = scalar_lea.sflag [#allocation13], %s2428
          %s2430 = sand.u32 %s262, 1
          %s2431 = smul.addr %s2430, 32
          %s2432 = scalar_lea.vmem [#allocation12], %s2431
          %2434 = dma.done %s2429, 512
        $region96: #{tpu_custom_call.1} parent=87 // pred_fallthru
          _
      $region88: #{tpu_custom_call.1} parent=5 // pred_fallthru
        _
    $region6: #{tpu_custom_call.1} parent=1 // loop_footer
      %s32 = sadd.s32 1, %s28
    $region7: #{tpu_custom_call.1} parent=1 // loop_footer_branch
      %27 = sbr.rel target = $region3
    $region8: #{tpu_custom_call.1} parent=1 // loop_exit
      _
    %2435 = vsyncpa [#allocation3], 1
    %s2436 = scalar_lea.sflag [#allocation3], 1
    %2437 = vsyncpa %s2436, 1
    %2438 = vsyncpa [#allocation6], 1
    %2439 = vsyncpa [#allocation9], 1
    %2440 = vsyncpa [#allocation4], 1
    %s2441 = scalar_lea.sflag [#allocation4], 1
    %2442 = vsyncpa %s2441, 1
    %2443 = vsyncpa [#allocation13], 1
    %s2444 = scalar_lea.sflag [#allocation13], 1
    %2445 = vsyncpa %s2444, 1

</llo_original>
